<compile_context>
chip_gen: v7x
topology: tpu7x:2x2x1
jax: 0.10.0
libtpu: 0.0.40
codegen_flags: <defaults>
</compile_context>

<pallas_src>
import functools

import jax
import jax.numpy as jnp
from jax import lax
from jax.experimental import pallas as pl
from jax.experimental.pallas import tpu as pltpu


def _round_up(x, m):
    return (x + m - 1) // m * m


def _erf_approx(x):
    # Abramowitz & Stegun 7.1.26 (|abs err| <= 1.5e-7), built only from ops
    # with guaranteed Mosaic lowerings (mul/add/select/exp/reciprocal).
    a1, a2, a3, a4, a5 = (0.254829592, -0.284496736, 1.421413741,
                          -1.453152027, 1.061405429)
    s = jnp.where(x >= 0.0, 1.0, -1.0)
    ax = jnp.abs(x)
    d = 1.0 + 0.3275911 * ax
    # EUP approximate reciprocal (frees VALU slots) + one Newton step so the
    # f32 path still matches exact GELU to ~1e-6.
    r = pl.reciprocal(d, approx=True)
    t = r * (2.0 - d * r)
    poly = ((((a5 * t + a4) * t + a3) * t + a2) * t + a1) * t
    return s * (1.0 - poly * jnp.exp(-ax * ax))


def _gelu_exact(x):
    # nn.GELU() default = exact (erf-based) GELU
    return 0.5 * x * (1.0 + _erf_approx(x * 0.7071067811865476))


def upscale_kernel(body_ref, halo_ref, w_ref, b_ref, o_ref, xwin_ref, *,
                   TH, Wp, Cin, Npack, CH):
    """One (batch, row-tile) grid step.

    body_ref : (1, TH*Wp, Cin)     padded rows [t*TH, t*TH+TH) of this image
    halo_ref : (1, 2*Wp, Cin)      padded rows [t*TH+TH, t*TH+TH+2) (halo)
    w_ref    : (9, Cin, Npack)     per-shift weights, 4 phases packed on lanes
    b_ref    : (1, Npack)          bias tiled over phases, zero-padded (f32)
    o_ref    : (1, 1, TH*Wp, Npack) packed output slab (f32)
    xwin_ref : ((TH+2)*Wp + 8, Cin) contiguous assembled window (scratch)
    """
    rows = TH * Wp
    win_rows = (TH + 2) * Wp

    # Assemble the contiguous (TH+2)-row padded window once per grid step.
    xwin_ref[pl.ds(0, rows), :] = body_ref[0]
    xwin_ref[pl.ds(rows, 2 * Wp), :] = halo_ref[0]
    # 8 alignment rows past the window: only ever read by seam (junk) output
    # columns; zero them so everything stays finite and deterministic.
    xwin_ref[pl.ds(win_rows, 8), :] = jnp.zeros((8, Cin), xwin_ref.dtype)

    bias = b_ref[...]                                   # (1, Npack) f32

    def chunk_body(c, carry):
        r0 = c * CH
        if not isinstance(r0, int):
            r0 = pl.multiple_of(r0, 8)                  # CH % 8 == 0
        acc = jnp.zeros((CH, Npack), jnp.float32)
        # shift s = a*3 + b  <->  padded spatial offset (a, b), a, b in {0,1,2};
        # in flat-row space that is just a contiguous row offset a*Wp + b.
        for a in range(3):
            for b in range(3):
                ofs = a * Wp + b
                lhs = xwin_ref[pl.ds(r0 + ofs, CH), :]  # contiguous row slice
                acc = acc + jnp.dot(lhs, w_ref[a * 3 + b],
                                    preferred_element_type=jnp.float32)
        y = _gelu_exact(acc + bias)
        o_ref[0, 0, pl.ds(r0, CH), :] = y               # single aligned store
        return carry

    nchunks = rows // CH
    if nchunks == 1:
        chunk_body(0, 0)                                # fully static path
    else:
        lax.fori_loop(0, nchunks, chunk_body, 0)


def _pack_weights(weight, compute_dtype, Npack):
    """PyTorch ConvTranspose2d weight (Cin, Cout, 4, 4) -> (9, Cin, Npack).

    ConvTranspose2d(k=4, s=2, p=1) split into its 4 output phases (ph, pw):
    output pixel (2i+ph, 2j+pw) is a 2x2 'conv' over the padded input with
    taps kh = kmap[ph][dh], kw = kmap[pw][dw].  Phases are packed along the
    lane dim (zero blocks for non-contributing (shift, phase) pairs) and the
    lane dim is zero-padded up to Npack (multiple of 128) for unmasked stores.
    """
    Cin, Cout = weight.shape[0], weight.shape[1]
    kmap = ((3, 1), (2, 0))            # [phase][tap] -> kernel index
    blocks = []
    for a in range(3):
        for b in range(3):
            cols = []
            for ph in range(2):
                for pw in range(2):
                    dh, dw = a - ph, b - pw
                    if 0 <= dh <= 1 and 0 <= dw <= 1:
                        cols.append(weight[:, :, kmap[ph][dh], kmap[pw][dw]])
                    else:
                        cols.append(jnp.zeros((Cin, Cout), weight.dtype))
            blk = jnp.concatenate(cols, axis=1)                    # (Cin, 4*Cout)
            if Npack > 4 * Cout:
                blk = jnp.pad(blk, ((0, 0), (0, Npack - 4 * Cout)))
            blocks.append(blk)
    return jnp.stack(blocks, axis=0).astype(compute_dtype)         # (9, Cin, Npack)


def _vmem_capacity_bytes():
    try:
        info = pltpu.get_tpu_info()
        return int(getattr(info, "vmem_capacity_bytes"))
    except Exception:
        return 64 * (1 << 20)          # conservative: v7x per-TensorCore VMEM


def _choose_chunk(rows, target):
    """Largest multiple of 8 that divides `rows` and is <= target."""
    target = max(8, min(rows, target))
    best = 8
    for d in range(8, target + 1, 8):
        if rows % d == 0:
            best = d
    return best


def _vmem_footprint(TH, Wp, Cin, Npack, eb, CH):
    rows = TH * Wp
    body = 2 * rows * Cin * eb                  # double-buffered body blocks
    halo = 2 * 2 * Wp * Cin * eb                # double-buffered halo blocks
    wts = 2 * 9 * Cin * Npack * eb              # constant weights (2-buffered)
    biasb = 2 * Npack * 4
    outb = 2 * rows * Npack * 4                 # double-buffered output block
    xwin = ((TH + 2) * Wp + 8) * Cin * eb       # assembled-window scratch
    tmps = 4 * CH * Npack * 4 + CH * Cin * eb   # chunk acc + GELU temps + lhs
    return body + halo + wts + biasb + outb + xwin + tmps


def _choose_tile_rows(H, Wp, Cin, Npack, eb, budget, chunk_target, requested=None):
    """Largest even divisor of H whose per-step VMEM footprint fits `budget`."""
    cands = [d for d in range(2, H + 1, 2) if H % d == 0]
    if requested is not None:
        if requested not in cands:
            raise ValueError(
                f"tile_rows={requested} must be an even divisor of H={H}")
        return requested
    ok = [d for d in cands
          if _vmem_footprint(d, Wp, Cin, Npack, eb,
                             _choose_chunk(d * Wp, chunk_target)) <= budget]
    return max(ok) if ok else min(cands)


def up_scale_forward(x_nchw, weight, bias, *, tile_rows=None, chunk_rows=512,
                     compute_dtype=jnp.float32):
    """Up_scale.forward: ConvTranspose2d(Cin, Cin//2, 4, stride=2, padding=1)
    followed by exact GELU.  x_nchw: (N, Cin, H, W); weight: (Cin, Cout, 4, 4)
    (PyTorch ConvTranspose2d layout); bias: (Cout,).  Returns NCHW
    (N, Cout, 2H, 2W) f32.  compute_dtype=jnp.bfloat16 feeds the MXU in bf16
    (half the input HBM/VMEM traffic; f32 accumulation)."""
    N, Cin, H, W = x_nchw.shape
    Cout = weight.shape[1]
    if weight.shape != (Cin, Cout, 4, 4):
        raise ValueError(f"unexpected weight shape {weight.shape}")
    if H % 2 != 0:
        raise ValueError("up_scale_forward requires an even H")
    eb = jnp.dtype(compute_dtype).itemsize

    Wp = _round_up(W + 2, 4)                      # padded width (alignment)
    Npack = _round_up(max(4 * Cout, 128), 128)    # lane-dense packed phases

    cap = _vmem_capacity_bytes()
    TH = _choose_tile_rows(H, Wp, Cin, Npack, eb, int(0.6 * cap),
                           chunk_rows, tile_rows)
    n_tiles = H // TH
    rows = TH * Wp
    CH = _choose_chunk(rows, chunk_rows)

    # --- layout glue (kept so the op is a drop-in NCHW replacement) ---
    # TODO(synk): callers that can feed NHWC and consume the phase-packed
    # output could drop both transposes, the pad and the final unpack.
    x = jnp.transpose(x_nchw, (0, 2, 3, 1)).astype(compute_dtype)   # NHWC
    xp = jnp.pad(x, ((0, 0), (1, 1), (1, Wp - W - 1), (0, 0)))      # (N, H+2, Wp, Cin)
    xflat = xp.reshape(N, (H + 2) * Wp, Cin)                        # flat rows

    wpk = _pack_weights(weight, compute_dtype, Npack)               # (9, Cin, Npack)
    bpk = jnp.pad(jnp.tile(bias, 4),
                  (0, Npack - 4 * Cout)).reshape(1, Npack).astype(jnp.float32)

    fp = _vmem_footprint(TH, Wp, Cin, Npack, eb, CH)
    vmem_limit = int(min(cap - 2 * (1 << 20),
                         max(int(0.85 * cap), int(1.25 * fp))))
    vmem_limit = max(vmem_limit, 16 * (1 << 20))

    half_th = TH // 2
    kern = functools.partial(upscale_kernel, TH=TH, Wp=Wp, Cin=Cin,
                             Npack=Npack, CH=CH)
    out = pl.pallas_call(
        kern,
        out_shape=jax.ShapeDtypeStruct((N, n_tiles, rows, Npack), jnp.float32),
        grid=(N, n_tiles),
        in_specs=[
            # body rows [t*TH, t*TH+TH) of the flat padded slab
            pl.BlockSpec((1, rows, Cin), lambda n, t: (n, t, 0)),
            # 2-row halo [t*TH+TH, t*TH+TH+2): start (t+1)*TH is an exact
            # block index of a 2*Wp-row block because TH is even.
            pl.BlockSpec((1, 2 * Wp, Cin), lambda n, t: (n, (t + 1) * half_th, 0)),
            pl.BlockSpec((9, Cin, Npack), lambda n, t: (0, 0, 0)),
            pl.BlockSpec((1, Npack), lambda n, t: (0, 0)),
        ],
        out_specs=pl.BlockSpec((1, 1, rows, Npack), lambda n, t: (n, t, 0, 0)),
        scratch_shapes=[pltpu.VMEM(((TH + 2) * Wp + 8, Cin), compute_dtype)],
        compiler_params=pltpu.CompilerParams(
            dimension_semantics=("parallel", "parallel"),
            vmem_limit_bytes=vmem_limit),
    )(xflat, xflat, wpk, bpk)

    # glue: drop seam columns / lane padding, unpack the 4 phases -> NCHW.
    y = out[..., :4 * Cout].reshape(N, n_tiles, TH, Wp, 2, 2, Cout)[:, :, :, :W]
    y = y.reshape(N, H, W, 2, 2, Cout)
    y = jnp.transpose(y, (0, 5, 1, 3, 2, 4)).reshape(N, Cout, 2 * H, 2 * W)
    return y


def _reference(x_nchw, weight, bias):
    # ConvTranspose2d(s=2, p=1, k=4) == dilated conv with flipped/transposed
    # kernel and padding k-1-p = 2, followed by exact GELU.
    wf = weight[:, :, ::-1, ::-1]
    w_oihw = jnp.transpose(wf, (1, 0, 2, 3))
    y = jax.lax.conv_general_dilated(
        x_nchw, w_oihw, window_strides=(1, 1),
        padding=((2, 2), (2, 2)), lhs_dilation=(2, 2),
        dimension_numbers=("NCHW", "OIHW", "NCHW"))
    y = y + bias[None, :, None, None]
    return 0.5 * y * (1.0 + jax.lax.erf(y * 0.7071067811865476))


if __name__ == "__main__":
    key = jax.random.PRNGKey(0)
    k1, k2, k3 = jax.random.split(key, 3)

    N, Cin, H, W = 2, 8, 16, 16          # in_channel = 8 -> out channels = 4
    Cout = Cin // 2

    x = jax.random.normal(k1, (N, Cin, H, W), jnp.float32)
    weight = 0.1 * jax.random.normal(k2, (Cin, Cout, 4, 4), jnp.float32)
    bias = 0.1 * jax.random.normal(k3, (Cout,), jnp.float32)

    ref = _reference(x, weight, bias)

    # f32 path with explicit row tiling + small chunks: exercises the
    # (N, H/TH) grid, the halo spec and the fori_loop chunked pipeline.
    f32_fn = jax.jit(functools.partial(up_scale_forward,
                                       tile_rows=8, chunk_rows=64))
    y32 = jax.block_until_ready(f32_fn(x, weight, bias))
    assert y32.shape == (N, Cout, 2 * H, 2 * W), y32.shape
    err32 = float(jnp.max(jnp.abs(y32 - ref)))
    assert jnp.allclose(y32, ref, atol=1e-4, rtol=1e-4), err32

    # bf16 MXU feed (halved input HBM/VMEM traffic), auto tile/chunk size.
    bf16_fn = jax.jit(functools.partial(up_scale_forward,
                                        compute_dtype=jnp.bfloat16))
    ybf = jax.block_until_ready(bf16_fn(x, weight, bias))
    errbf = float(jnp.max(jnp.abs(ybf - ref)))
    assert jnp.allclose(ybf, ref, atol=2e-2, rtol=2e-2), errbf

    print("KERNEL_OK")
</pallas_src>

<mosaic_0001>
module attributes {stable_mosaic.version = 11 : i64} {
  func.func @upscale_kernel(%arg0: i32, %arg1: i32, %arg2: memref<1x160x8xf32, #tpu.memory_space<vmem>>, %arg3: memref<1x40x8xf32, #tpu.memory_space<vmem>>, %arg4: memref<9x8x128xf32, #tpu.memory_space<vmem>>, %arg5: memref<1x128xf32, #tpu.memory_space<vmem>>, %arg6: memref<1x1x160x128xf32, #tpu.memory_space<vmem>>, %arg7: memref<208x8xf32, #tpu.memory_space<vmem>>) attributes {dimension_semantics = [#tpu.dimension_semantics<parallel>, #tpu.dimension_semantics<parallel>], iteration_bounds = array<i64: 2, 2>, scalar_prefetch = 0 : i64, scratch_operands = 1 : i64, tpu.core_type = #tpu.core_type<tc>, window_params = [{transform_indices = @transform_0, window_bounds = array<i64: 1, 160, 8>}, {transform_indices = @transform_1, window_bounds = array<i64: 1, 40, 8>}, {pipeline_mode = #tpu.pipeline_mode<synchronous>, transform_indices = @transform_2, window_bounds = array<i64: 9, 8, 128>}, {pipeline_mode = #tpu.pipeline_mode<synchronous>, transform_indices = @transform_3, window_bounds = array<i64: 1, 128>}, {transform_indices = @transform_4, window_bounds = array<i64: 1, 1, 160, 128>}]} {
    %c0 = arith.constant 0 : index
    %c0_0 = arith.constant 0 : index
    %c0_1 = arith.constant 0 : index
    %0 = vector.load %arg2[%c0, %c0_0, %c0_1] : memref<1x160x8xf32, #tpu.memory_space<vmem>>, vector<1x160x8xf32>
    %1 = vector.shape_cast %0 : vector<1x160x8xf32> to vector<160x8xf32>
    %c0_2 = arith.constant 0 : index
    %c0_3 = arith.constant 0 : index
    %2 = vector.load %arg7[%c0_2, %c0_3] : memref<208x8xf32, #tpu.memory_space<vmem>>, vector<160x8xf32>
    tpu.vector_store %arg7[%c0_2, %c0_3], %1 {strides = array<i32>} : memref<208x8xf32, #tpu.memory_space<vmem>>, vector<160x8xf32>,
    %c0_4 = arith.constant 0 : index
    %c0_5 = arith.constant 0 : index
    %c0_6 = arith.constant 0 : index
    %3 = vector.load %arg3[%c0_4, %c0_5, %c0_6] : memref<1x40x8xf32, #tpu.memory_space<vmem>>, vector<1x40x8xf32>
    %4 = vector.shape_cast %3 : vector<1x40x8xf32> to vector<40x8xf32>
    %c160 = arith.constant 160 : index
    %c0_7 = arith.constant 0 : index
    %5 = vector.load %arg7[%c160, %c0_7] : memref<208x8xf32, #tpu.memory_space<vmem>>, vector<40x8xf32>
    tpu.vector_store %arg7[%c160, %c0_7], %4 {strides = array<i32>} : memref<208x8xf32, #tpu.memory_space<vmem>>, vector<40x8xf32>,
    %cst = arith.constant 0.000000e+00 : f32
    %6 = vector.broadcast %cst : f32 to vector<8x8xf32>
    %c200 = arith.constant 200 : index
    %c0_8 = arith.constant 0 : index
    %7 = vector.load %arg7[%c200, %c0_8] : memref<208x8xf32, #tpu.memory_space<vmem>>, vector<8x8xf32>
    tpu.vector_store %arg7[%c200, %c0_8], %6 {strides = array<i32>} : memref<208x8xf32, #tpu.memory_space<vmem>>, vector<8x8xf32>,
    %c0_9 = arith.constant 0 : index
    %c0_10 = arith.constant 0 : index
    %8 = vector.load %arg5[%c0_9, %c0_10] : memref<1x128xf32, #tpu.memory_space<vmem>>, vector<1x128xf32>
    %c0_i32 = arith.constant 0 : i32
    %c4_i32 = arith.constant 4 : i32
    %9 = arith.addi %c0_i32, %c4_i32 : i32
    %c1_i32 = arith.constant 1 : i32
    scf.for %arg8 = %c0_i32 to %9 step %c1_i32  : i32 {
      %c40_i32 = arith.constant 40 : i32
      %10 = arith.muli %arg8, %c40_i32 : i32
      %11 = tpu.assume_multiple %10, 8 : i32
      %cst_12 = arith.constant 0.000000e+00 : f32
      %12 = vector.broadcast %cst_12 : f32 to vector<40x128xf32>
      %c0_i32_13 = arith.constant 0 : i32
      %13 = arith.addi %11, %c0_i32_13 : i32
      %14 = arith.index_cast %13 : i32 to index
      %c0_14 = arith.constant 0 : index
      %15 = vector.load %arg7[%14, %c0_14] : memref<208x8xf32, #tpu.memory_space<vmem>>, vector<40x8xf32>
      %c0_15 = arith.constant 0 : index
      %c0_16 = arith.constant 0 : index
      %c0_17 = arith.constant 0 : index
      %16 = vector.load %arg4[%c0_15, %c0_16, %c0_17] : memref<9x8x128xf32, #tpu.memory_space<vmem>>, vector<1x8x128xf32>
      %17 = vector.shape_cast %16 : vector<1x8x128xf32> to vector<8x128xf32>
      %cst_18 = arith.constant dense<0.000000e+00> : vector<40x128xf32>
      %18 = tpu.matmul %15, %17, %cst_18 {dimension_numbers = #tpu.dot_dimension_numbers<[1], [0], [0], [1], [0, 0, 1, 1], [], []>} : vector<40x8xf32>, vector<8x128xf32>, vector<40x128xf32> -> vector<40x128xf32>
      %19 = arith.addf %12, %18 : vector<40x128xf32>
      %c1_i32_19 = arith.constant 1 : i32
      %20 = arith.addi %11, %c1_i32_19 : i32
      %21 = arith.index_cast %20 : i32 to index
      %c0_20 = arith.constant 0 : index
      %22 = vector.load %arg7[%21, %c0_20] : memref<208x8xf32, #tpu.memory_space<vmem>>, vector<40x8xf32>
      %c1 = arith.constant 1 : index
      %c0_21 = arith.constant 0 : index
      %c0_22 = arith.constant 0 : index
      %23 = vector.load %arg4[%c1, %c0_21, %c0_22] : memref<9x8x128xf32, #tpu.memory_space<vmem>>, vector<1x8x128xf32>
      %24 = vector.shape_cast %23 : vector<1x8x128xf32> to vector<8x128xf32>
      %cst_23 = arith.constant dense<0.000000e+00> : vector<40x128xf32>
      %25 = tpu.matmul %22, %24, %cst_23 {dimension_numbers = #tpu.dot_dimension_numbers<[1], [0], [0], [1], [0, 0, 1, 1], [], []>} : vector<40x8xf32>, vector<8x128xf32>, vector<40x128xf32> -> vector<40x128xf32>
      %26 = arith.addf %19, %25 : vector<40x128xf32>
      %c2_i32 = arith.constant 2 : i32
      %27 = arith.addi %11, %c2_i32 : i32
      %28 = arith.index_cast %27 : i32 to index
      %c0_24 = arith.constant 0 : index
      %29 = vector.load %arg7[%28, %c0_24] : memref<208x8xf32, #tpu.memory_space<vmem>>, vector<40x8xf32>
      %c2 = arith.constant 2 : index
      %c0_25 = arith.constant 0 : index
      %c0_26 = arith.constant 0 : index
      %30 = vector.load %arg4[%c2, %c0_25, %c0_26] : memref<9x8x128xf32, #tpu.memory_space<vmem>>, vector<1x8x128xf32>
      %31 = vector.shape_cast %30 : vector<1x8x128xf32> to vector<8x128xf32>
      %cst_27 = arith.constant dense<0.000000e+00> : vector<40x128xf32>
      %32 = tpu.matmul %29, %31, %cst_27 {dimension_numbers = #tpu.dot_dimension_numbers<[1], [0], [0], [1], [0, 0, 1, 1], [], []>} : vector<40x8xf32>, vector<8x128xf32>, vector<40x128xf32> -> vector<40x128xf32>
      %33 = arith.addf %26, %32 : vector<40x128xf32>
      %c20_i32 = arith.constant 20 : i32
      %34 = arith.addi %11, %c20_i32 : i32
      %35 = arith.index_cast %34 : i32 to index
      %c0_28 = arith.constant 0 : index
      %36 = vector.load %arg7[%35, %c0_28] : memref<208x8xf32, #tpu.memory_space<vmem>>, vector<40x8xf32>
      %c3 = arith.constant 3 : index
      %c0_29 = arith.constant 0 : index
      %c0_30 = arith.constant 0 : index
      %37 = vector.load %arg4[%c3, %c0_29, %c0_30] : memref<9x8x128xf32, #tpu.memory_space<vmem>>, vector<1x8x128xf32>
      %38 = vector.shape_cast %37 : vector<1x8x128xf32> to vector<8x128xf32>
      %cst_31 = arith.constant dense<0.000000e+00> : vector<40x128xf32>
      %39 = tpu.matmul %36, %38, %cst_31 {dimension_numbers = #tpu.dot_dimension_numbers<[1], [0], [0], [1], [0, 0, 1, 1], [], []>} : vector<40x8xf32>, vector<8x128xf32>, vector<40x128xf32> -> vector<40x128xf32>
      %40 = arith.addf %33, %39 : vector<40x128xf32>
      %c21_i32 = arith.constant 21 : i32
      %41 = arith.addi %11, %c21_i32 : i32
      %42 = arith.index_cast %41 : i32 to index
      %c0_32 = arith.constant 0 : index
      %43 = vector.load %arg7[%42, %c0_32] : memref<208x8xf32, #tpu.memory_space<vmem>>, vector<40x8xf32>
      %c4 = arith.constant 4 : index
      %c0_33 = arith.constant 0 : index
      %c0_34 = arith.constant 0 : index
      %44 = vector.load %arg4[%c4, %c0_33, %c0_34] : memref<9x8x128xf32, #tpu.memory_space<vmem>>, vector<1x8x128xf32>
      %45 = vector.shape_cast %44 : vector<1x8x128xf32> to vector<8x128xf32>
      %cst_35 = arith.constant dense<0.000000e+00> : vector<40x128xf32>
      %46 = tpu.matmul %43, %45, %cst_35 {dimension_numbers = #tpu.dot_dimension_numbers<[1], [0], [0], [1], [0, 0, 1, 1], [], []>} : vector<40x8xf32>, vector<8x128xf32>, vector<40x128xf32> -> vector<40x128xf32>
      %47 = arith.addf %40, %46 : vector<40x128xf32>
      %c22_i32 = arith.constant 22 : i32
      %48 = arith.addi %11, %c22_i32 : i32
      %49 = arith.index_cast %48 : i32 to index
      %c0_36 = arith.constant 0 : index
      %50 = vector.load %arg7[%49, %c0_36] : memref<208x8xf32, #tpu.memory_space<vmem>>, vector<40x8xf32>
      %c5 = arith.constant 5 : index
      %c0_37 = arith.constant 0 : index
      %c0_38 = arith.constant 0 : index
      %51 = vector.load %arg4[%c5, %c0_37, %c0_38] : memref<9x8x128xf32, #tpu.memory_space<vmem>>, vector<1x8x128xf32>
      %52 = vector.shape_cast %51 : vector<1x8x128xf32> to vector<8x128xf32>
      %cst_39 = arith.constant dense<0.000000e+00> : vector<40x128xf32>
      %53 = tpu.matmul %50, %52, %cst_39 {dimension_numbers = #tpu.dot_dimension_numbers<[1], [0], [0], [1], [0, 0, 1, 1], [], []>} : vector<40x8xf32>, vector<8x128xf32>, vector<40x128xf32> -> vector<40x128xf32>
      %54 = arith.addf %47, %53 : vector<40x128xf32>
      %c40_i32_40 = arith.constant 40 : i32
      %55 = arith.addi %11, %c40_i32_40 : i32
      %56 = arith.index_cast %55 : i32 to index
      %c0_41 = arith.constant 0 : index
      %57 = vector.load %arg7[%56, %c0_41] : memref<208x8xf32, #tpu.memory_space<vmem>>, vector<40x8xf32>
      %c6 = arith.constant 6 : index
      %c0_42 = arith.constant 0 : index
      %c0_43 = arith.constant 0 : index
      %58 = vector.load %arg4[%c6, %c0_42, %c0_43] : memref<9x8x128xf32, #tpu.memory_space<vmem>>, vector<1x8x128xf32>
      %59 = vector.shape_cast %58 : vector<1x8x128xf32> to vector<8x128xf32>
      %cst_44 = arith.constant dense<0.000000e+00> : vector<40x128xf32>
      %60 = tpu.matmul %57, %59, %cst_44 {dimension_numbers = #tpu.dot_dimension_numbers<[1], [0], [0], [1], [0, 0, 1, 1], [], []>} : vector<40x8xf32>, vector<8x128xf32>, vector<40x128xf32> -> vector<40x128xf32>
      %61 = arith.addf %54, %60 : vector<40x128xf32>
      %c41_i32 = arith.constant 41 : i32
      %62 = arith.addi %11, %c41_i32 : i32
      %63 = arith.index_cast %62 : i32 to index
      %c0_45 = arith.constant 0 : index
      %64 = vector.load %arg7[%63, %c0_45] : memref<208x8xf32, #tpu.memory_space<vmem>>, vector<40x8xf32>
      %c7 = arith.constant 7 : index
      %c0_46 = arith.constant 0 : index
      %c0_47 = arith.constant 0 : index
      %65 = vector.load %arg4[%c7, %c0_46, %c0_47] : memref<9x8x128xf32, #tpu.memory_space<vmem>>, vector<1x8x128xf32>
      %66 = vector.shape_cast %65 : vector<1x8x128xf32> to vector<8x128xf32>
      %cst_48 = arith.constant dense<0.000000e+00> : vector<40x128xf32>
      %67 = tpu.matmul %64, %66, %cst_48 {dimension_numbers = #tpu.dot_dimension_numbers<[1], [0], [0], [1], [0, 0, 1, 1], [], []>} : vector<40x8xf32>, vector<8x128xf32>, vector<40x128xf32> -> vector<40x128xf32>
      %68 = arith.addf %61, %67 : vector<40x128xf32>
      %c42_i32 = arith.constant 42 : i32
      %69 = arith.addi %11, %c42_i32 : i32
      %70 = arith.index_cast %69 : i32 to index
      %c0_49 = arith.constant 0 : index
      %71 = vector.load %arg7[%70, %c0_49] : memref<208x8xf32, #tpu.memory_space<vmem>>, vector<40x8xf32>
      %c8 = arith.constant 8 : index
      %c0_50 = arith.constant 0 : index
      %c0_51 = arith.constant 0 : index
      %72 = vector.load %arg4[%c8, %c0_50, %c0_51] : memref<9x8x128xf32, #tpu.memory_space<vmem>>, vector<1x8x128xf32>
      %73 = vector.shape_cast %72 : vector<1x8x128xf32> to vector<8x128xf32>
      %cst_52 = arith.constant dense<0.000000e+00> : vector<40x128xf32>
      %74 = tpu.matmul %71, %73, %cst_52 {dimension_numbers = #tpu.dot_dimension_numbers<[1], [0], [0], [1], [0, 0, 1, 1], [], []>} : vector<40x8xf32>, vector<8x128xf32>, vector<40x128xf32> -> vector<40x128xf32>
      %75 = arith.addf %68, %74 : vector<40x128xf32>
      %76 = vector.broadcast %8 : vector<1x128xf32> to vector<40x128xf32>
      %77 = arith.addf %75, %76 : vector<40x128xf32>
      %cst_53 = arith.constant 5.000000e-01 : f32
      %78 = vector.broadcast %cst_53 : f32 to vector<40x128xf32>
      %79 = arith.mulf %78, %77 : vector<40x128xf32>
      %cst_54 = arith.constant 0.707106769 : f32
      %80 = vector.broadcast %cst_54 : f32 to vector<40x128xf32>
      %81 = arith.mulf %77, %80 : vector<40x128xf32>
      %cst_55 = arith.constant 0.000000e+00 : f32
      %82 = vector.broadcast %cst_55 : f32 to vector<40x128xf32>
      %83 = arith.cmpf oge, %81, %82 : vector<40x128xf32>
      %cst_56 = arith.constant 1.000000e+00 : f32
      %cst_57 = arith.constant -1.000000e+00 : f32
      %84 = vector.broadcast %cst_56 : f32 to vector<40x128xf32>
      %85 = vector.broadcast %cst_57 : f32 to vector<40x128xf32>
      %86 = arith.select %83, %84, %85 : vector<40x128xi1>, vector<40x128xf32>
      %87 = math.absf %81 : vector<40x128xf32>
      %cst_58 = arith.constant 0.327591091 : f32
      %88 = vector.broadcast %cst_58 : f32 to vector<40x128xf32>
      %89 = arith.mulf %88, %87 : vector<40x128xf32>
      %cst_59 = arith.constant 1.000000e+00 : f32
      %90 = vector.broadcast %cst_59 : f32 to vector<40x128xf32>
      %91 = arith.addf %90, %89 : vector<40x128xf32>
      %92 = tpu.reciprocal %91 {approx = true} : vector<40x128xf32> -> vector<40x128xf32>
      %93 = arith.mulf %91, %92 : vector<40x128xf32>
      %cst_60 = arith.constant 2.000000e+00 : f32
      %94 = vector.broadcast %cst_60 : f32 to vector<40x128xf32>
      %95 = arith.subf %94, %93 : vector<40x128xf32>
      %96 = arith.mulf %92, %95 : vector<40x128xf32>
      %cst_61 = arith.constant 1.06140542 : f32
      %97 = vector.broadcast %cst_61 : f32 to vector<40x128xf32>
      %98 = arith.mulf %97, %96 : vector<40x128xf32>
      %cst_62 = arith.constant -1.45315206 : f32
      %99 = vector.broadcast %cst_62 : f32 to vector<40x128xf32>
      %100 = arith.addf %98, %99 : vector<40x128xf32>
      %101 = arith.mulf %100, %96 : vector<40x128xf32>
      %cst_63 = arith.constant 1.42141378 : f32
      %102 = vector.broadcast %cst_63 : f32 to vector<40x128xf32>
      %103 = arith.addf %101, %102 : vector<40x128xf32>
      %104 = arith.mulf %103, %96 : vector<40x128xf32>
      %cst_64 = arith.constant -0.284496725 : f32
      %105 = vector.broadcast %cst_64 : f32 to vector<40x128xf32>
      %106 = arith.addf %104, %105 : vector<40x128xf32>
      %107 = arith.mulf %106, %96 : vector<40x128xf32>
      %cst_65 = arith.constant 0.254829586 : f32
      %108 = vector.broadcast %cst_65 : f32 to vector<40x128xf32>
      %109 = arith.addf %107, %108 : vector<40x128xf32>
      %110 = arith.mulf %109, %96 : vector<40x128xf32>
      %cst_66 = arith.constant 0.000000e+00 : f32
      %111 = vector.broadcast %cst_66 : f32 to vector<40x128xf32>
      %112 = arith.subf %111, %87 : vector<40x128xf32>
      %113 = arith.mulf %112, %87 : vector<40x128xf32>
      %114 = math.exp %113 : vector<40x128xf32>
      %115 = arith.mulf %110, %114 : vector<40x128xf32>
      %cst_67 = arith.constant 1.000000e+00 : f32
      %116 = vector.broadcast %cst_67 : f32 to vector<40x128xf32>
      %117 = arith.subf %116, %115 : vector<40x128xf32>
      %118 = arith.mulf %86, %117 : vector<40x128xf32>
      %cst_68 = arith.constant 1.000000e+00 : f32
      %119 = vector.broadcast %cst_68 : f32 to vector<40x128xf32>
      %120 = arith.addf %119, %118 : vector<40x128xf32>
      %121 = arith.mulf %79, %120 : vector<40x128xf32>
      %c0_69 = arith.constant 0 : index
      %c0_70 = arith.constant 0 : index
      %122 = arith.index_cast %11 : i32 to index
      %c0_71 = arith.constant 0 : index
      %123 = vector.load %arg6[%c0_69, %c0_70, %122, %c0_71] : memref<1x1x160x128xf32, #tpu.memory_space<vmem>>, vector<1x1x40x128xf32>
      %124 = vector.shape_cast %123 : vector<1x1x40x128xf32> to vector<40x128xf32>
      %125 = vector.shape_cast %121 : vector<40x128xf32> to vector<1x1x40x128xf32>
      tpu.vector_store %arg6[%c0_69, %c0_70, %122, %c0_71], %125 {strides = array<i32>} : memref<1x1x160x128xf32, #tpu.memory_space<vmem>>, vector<1x1x40x128xf32>,
    }
    %c4_i32_11 = arith.constant 4 : i32
    return
  }
  func.func @transform_0(%arg0: i32, %arg1: i32) -> (i32, i32, i32) {
    %c0_i32 = arith.constant 0 : i32
    %c0_i32_0 = arith.constant 0 : i32
    return %arg0, %arg1, %c0_i32 : i32, i32, i32
  }
  func.func @transform_1(%arg0: i32, %arg1: i32) -> (i32, i32, i32) {
    %c1_i32 = arith.constant 1 : i32
    %0 = arith.addi %arg1, %c1_i32 : i32
    %c4_i32 = arith.constant 4 : i32
    %1 = arith.muli %0, %c4_i32 : i32
    %c0_i32 = arith.constant 0 : i32
    %c0_i32_0 = arith.constant 0 : i32
    return %arg0, %1, %c0_i32 : i32, i32, i32
  }
  func.func @transform_2(%arg0: i32, %arg1: i32) -> (i32, i32, i32) {
    %c0_i32 = arith.constant 0 : i32
    %c0_i32_0 = arith.constant 0 : i32
    %c0_i32_1 = arith.constant 0 : i32
    %c0_i32_2 = arith.constant 0 : i32
    return %c0_i32, %c0_i32_0, %c0_i32_1 : i32, i32, i32
  }
  func.func @transform_3(%arg0: i32, %arg1: i32) -> (i32, i32) {
    %c0_i32 = arith.constant 0 : i32
    %c0_i32_0 = arith.constant 0 : i32
    %c0_i32_1 = arith.constant 0 : i32
    return %c0_i32, %c0_i32_0 : i32, i32
  }
  func.func @transform_4(%arg0: i32, %arg1: i32) -> (i32, i32, i32, i32) {
    %c0_i32 = arith.constant 0 : i32
    %c0_i32_0 = arith.constant 0 : i32
    %c0_i32_1 = arith.constant 0 : i32
    return %arg0, %arg1, %c0_i32, %c0_i32_0 : i32, i32, i32, i32
  }
}

</mosaic_0001>

<llo_original>
// kernel: tile.8
$region0: #{tile.8}
  #allocation0 [shape = 's32[1]{0}', space=sflag, size = 0x4, scoped, tag = 'scoped memory for tile.8']
  %s0 = inlined_call_operand.vmem [shape: f32[4], index: 0, kind: input, shape index: {}]
  %s1 = inlined_call_operand.vmem [shape: f32[4,4], index: 1, kind: output, shape index: {}]
  // Predicated region
  $region2: #{tile.8} parent=0 // pred_check
    _
  $region3: #{tile.8} parent=0 // pred_check_branch
    %3 = sbr.rel (0) target = $region5
  $region4: #{tile.8} parent=0 // pred_region
    _
  $region5: #{tile.8} parent=0 // pred_fallthru
    _
  %v4 = vld [vmem:[%s0] ss:$0 sm:$0xff]
  %5 = vst [vmem:[%s1] sm:$0xf] %v4

// kernel: tile.9
$region0: #{tile.9}
  %s0 = inlined_call_operand.vmem [shape: f32[4,4], index: 0, kind: input, shape index: {}]
  %s1 = inlined_call_operand.vmem [shape: f32[16], index: 1, kind: output, shape index: {}]
  $region1: #{tile.9} parent=0
    #allocation0 [shape = 'u8[4096]{0}', space=vmem, size = 0x1000, scoped, tag = 'scoped mem for output reshape']
    #allocation1 [shape = 'u8[4096]{0}', space=vmem, size = 0x1000, scoped, tag = 'scoped mem for input reshape']
    %s3 = sshllo.u32 0, 4
    %v4 = vld [vmem:[%s0] sm:%s3]
    %5 = vst [vmem:[#allocation1] sm:%s3] %v4
    %v6 = vld [vmem:[#allocation1] sm:$0x1]
    %vm7 = vcmask 31744
    %8 = vst.msk [vmem:[#allocation0] sm:$0x1] %vm7, %v6
    %s9 = scalar_lea.vmem [#allocation1], 3
    %v10 = vld [vmem:[%s9] sm:$0x1]
    %11 = vrot.lane.b32.xlu0 %v10, 12
    %v12 = vpop.permute.xlu0 %11
    %vm13 = vcmask 130144
    %14 = vst.msk [vmem:[#allocation0] sm:$0x1] %vm13, %v12
    %s15 = scalar_lea.vmem [#allocation1], 2
    %v16 = vld [vmem:[%s15] sm:$0x1]
    %17 = vrot.lane.b32.xlu0 %v16, 8
    %v18 = vpop.permute.xlu0 %17
    %vm19 = vcmask 97344
    %20 = vst.msk [vmem:[#allocation0] sm:$0x1] %vm19, %v18
    %s21 = scalar_lea.vmem [#allocation1], 1
    %v22 = vld [vmem:[%s21] sm:$0x1]
    %23 = vrot.lane.b32.xlu0 %v22, 4
    %v24 = vpop.permute.xlu0 %23
    %vm25 = vcmask 64544
    %26 = vst.msk [vmem:[#allocation0] sm:$0x1] %vm25, %v24
    %s28 = sshllo.u32 0, 1
    %v30 = vld [vmem:[#allocation0] sm:%s28]
    %s31 = sshllo.u32 0, 1
    %32 = vst [vmem:[%s1] sm:%s31] %v30

// kernel: up_scale_forward.1
$region0: #{up_scale_forward.1}
  #allocation0 [shape = 'u32[]', space=smem, size = 0x4, offset = 0x4, fixed_abs, tag = 'smem constant byte address 0x4 - core index']
  #allocation1 [shape = 'u32[144,128]{1,0:T(1,128)}', space=vmem, size = 0x12000, scoped, tag = 'internal scratch']
  #allocation2 [shape = 'f32[208,8]{1,0:T(8,128)}', space=vmem, size = 0x1a000, scoped, tag = 'scratch operand']
  %s0 = inlined_call_operand.vmem [shape: f32[2,360,8], index: 0, kind: input, shape index: {}, may-alias: {0,1}]
  %s1 = inlined_call_operand.vmem [shape: f32[2,360,8], index: 1, kind: input, shape index: {}, may-alias: {0,1}]
  %s2 = inlined_call_operand.vmem [shape: f32[9,8,128], index: 2, kind: input, shape index: {}]
  %s3 = inlined_call_operand.vmem [shape: f32[1,128], index: 3, kind: input, shape index: {}]
  %s4 = inlined_call_operand.vmem [shape: f32[2,2,160,128], index: 4, kind: output, shape index: {}]
  %s5 = sld [smem:[#allocation0]]
  $region56: #{up_scale_forward.1} parent=0
    _
  %s7 = ssub.s32 1, %s5
  %s8 = scalar_select 0, %s7, %s5
  loop: start=0, step=1, limit=6
  $region2: #{up_scale_forward.1} parent=0 // loop_pre_header
    _
  $region3: #{up_scale_forward.1} parent=0 // loop_header
    %s10 = sphi 0, %s14
    %p11 = scmp.ge.s32.totalorder %s10, 6
    %s17 = sphi 0, %s29
    %s18 = sphi 0, %s25
    %s19 = sphi 0, %s17
    %s20 = sphi 0, %s18
    %s21 = sphi 0, %s19
    %s22 = sphi 0, %s20
    %s34 = sphi 0, %s36
    %s37 = sphi 0, %s34
    %s38 = sphi 0, %s37
    %s54 = sphi 0, %s38
    %s66 = sphi 0, %s68
    %s69 = sphi 0, %s66
    %s70 = sphi 0, %s69
    %s86 = sphi 0, %s70
    %s90 = sphi 0, %s90
    %s92 = sphi 0, %s90
    %s93 = sphi 0, %s92
    %s107 = sphi 0, %s93
    %s111 = sphi 0, %s111
    %s113 = sphi 0, %s111
    %s114 = sphi 0, %s113
    %s128 = sphi 0, %s114
    %s136 = sphi 0, %s138
    %s139 = sphi 0, %s136
    %s140 = sphi 0, %s139
    %s156 = sphi 0, %s140
  $region4: #{up_scale_forward.1} parent=0 // loop_header_branch
    %13 = sbr.rel (%p11) target = $region8
  $region5: #{up_scale_forward.1} parent=0 // loop_body
    %s15 = ssub.s32 %s10, 1
    %s16 = ssub.s32 %s10, 2
    %s23 = sadd.s32 1, %s18
    %p24 = scmp.ge.s32.totalorder %s23, 2
    %s25 = scalar_select %p24, 0, %s23
    %s26 = sadd.s32 1, %s17
    %s27 = scalar_select %p24, %s26, %s17
    %p28 = scmp.ge.s32.totalorder %s27, 2
    %s29 = scalar_select %p28, 0, %s27
    %s30 = ssub.s32 %s17, %s29
    %s31 = ssub.s32 %s18, %s25
    %s32 = sor.u32 %s30, %s31
    %p33 = scmp.eq.s32.totalorder %s32, 0
    %s35 = sadd.s32 %s34, 1
    %s36 = scalar_select %p33, %s34, %s35
    %p39 = pneg %p33
    %p40 = scmp.eq.s32.totalorder %s10, 3
    %p41 = por %p39, %p40
    %p42 = scmp.ne.s32.totalorder %s34, %s37
    %p43 = scmp.eq.s32.totalorder %s10, 0
    %p44 = por %p42, %p43
    %p45 = scmp.ne.s32.totalorder %s34, %s37
    %p46 = scmp.eq.s32.totalorder %s15, 3
    %p47 = por %p45, %p46
    %p48 = scmp.ne.s32.totalorder %s37, %s38
    %p49 = scmp.eq.s32.totalorder %s15, 0
    %p50 = por %p48, %p49
    %p51 = scmp.ne.s32.totalorder %s37, %s38
    %p52 = scmp.eq.s32.totalorder %s16, 3
    %p53 = por %p51, %p52
    %p55 = scmp.ne.s32.totalorder %s38, %s54
    %p56 = scmp.eq.s32.totalorder %s16, 0
    %p57 = por %p55, %p56
    %s58 = sadd.s32 %s18, 1
    %s59 = smul.u32 %s58, 4
    %s60 = sadd.s32 %s25, 1
    %s61 = smul.u32 %s60, 4
    %s62 = ssub.s32 %s17, %s29
    %s63 = ssub.s32 %s59, %s61
    %s64 = sor.u32 %s62, %s63
    %p65 = scmp.eq.s32.totalorder %s64, 0
    %s67 = sadd.s32 %s66, 1
    %s68 = scalar_select %p65, %s66, %s67
    %p71 = pneg %p65
    %p72 = scmp.eq.s32.totalorder %s10, 3
    %p73 = por %p71, %p72
    %p74 = scmp.ne.s32.totalorder %s66, %s69
    %p75 = scmp.eq.s32.totalorder %s10, 0
    %p76 = por %p74, %p75
    %p77 = scmp.ne.s32.totalorder %s66, %s69
    %p78 = scmp.eq.s32.totalorder %s15, 3
    %p79 = por %p77, %p78
    %p80 = scmp.ne.s32.totalorder %s69, %s70
    %p81 = scmp.eq.s32.totalorder %s15, 0
    %p82 = por %p80, %p81
    %p83 = scmp.ne.s32.totalorder %s69, %s70
    %p84 = scmp.eq.s32.totalorder %s16, 3
    %p85 = por %p83, %p84
    %p87 = scmp.ne.s32.totalorder %s70, %s86
    %p88 = scmp.eq.s32.totalorder %s16, 0
    %p89 = por %p87, %p88
    %s91 = sadd.s32 %s90, 1
    %p94 = scmp.eq.s32.totalorder %s10, 3
    %p95 = scmp.ne.s32.totalorder %s90, %s92
    %p96 = scmp.eq.s32.totalorder %s10, 0
    %p97 = por %p95, %p96
    %p98 = scmp.ne.s32.totalorder %s90, %s92
    %p99 = scmp.eq.s32.totalorder %s15, 3
    %p100 = por %p98, %p99
    %p101 = scmp.ne.s32.totalorder %s92, %s93
    %p102 = scmp.eq.s32.totalorder %s15, 0
    %p103 = por %p101, %p102
    %p104 = scmp.ne.s32.totalorder %s92, %s93
    %p105 = scmp.eq.s32.totalorder %s16, 3
    %p106 = por %p104, %p105
    %p108 = scmp.ne.s32.totalorder %s93, %s107
    %p109 = scmp.eq.s32.totalorder %s16, 0
    %p110 = por %p108, %p109
    %s112 = sadd.s32 %s111, 1
    %p115 = scmp.eq.s32.totalorder %s10, 3
    %p116 = scmp.ne.s32.totalorder %s111, %s113
    %p117 = scmp.eq.s32.totalorder %s10, 0
    %p118 = por %p116, %p117
    %p119 = scmp.ne.s32.totalorder %s111, %s113
    %p120 = scmp.eq.s32.totalorder %s15, 3
    %p121 = por %p119, %p120
    %p122 = scmp.ne.s32.totalorder %s113, %s114
    %p123 = scmp.eq.s32.totalorder %s15, 0
    %p124 = por %p122, %p123
    %p125 = scmp.ne.s32.totalorder %s113, %s114
    %p126 = scmp.eq.s32.totalorder %s16, 3
    %p127 = por %p125, %p126
    %p129 = scmp.ne.s32.totalorder %s114, %s128
    %p130 = scmp.eq.s32.totalorder %s16, 0
    %p131 = por %p129, %p130
    %s132 = ssub.s32 %s17, %s29
    %s133 = ssub.s32 %s18, %s25
    %s134 = sor.u32 %s132, %s133
    %p135 = scmp.eq.s32.totalorder %s134, 0
    %s137 = sadd.s32 %s136, 1
    %s138 = scalar_select %p135, %s136, %s137
    %p141 = pneg %p135
    %p142 = scmp.eq.s32.totalorder %s10, 3
    %p143 = por %p141, %p142
    %p144 = scmp.ne.s32.totalorder %s136, %s139
    %p145 = scmp.eq.s32.totalorder %s10, 0
    %p146 = por %p144, %p145
    %p147 = scmp.ne.s32.totalorder %s136, %s139
    %p148 = scmp.eq.s32.totalorder %s15, 3
    %p149 = por %p147, %p148
    %p150 = scmp.ne.s32.totalorder %s139, %s140
    %p151 = scmp.eq.s32.totalorder %s15, 0
    %p152 = por %p150, %p151
    %p153 = scmp.ne.s32.totalorder %s139, %s140
    %p154 = scmp.eq.s32.totalorder %s16, 3
    %p155 = por %p153, %p154
    %p157 = scmp.ne.s32.totalorder %s140, %s156
    %p158 = scmp.eq.s32.totalorder %s16, 0
    %p159 = por %p157, %p158
    %p160 = scmp.le.s32.totalorder 1, %s10
    %p161 = scmp.lt.s32.totalorder %s10, 5
    %p162 = pnand %p160, %p161
    %p163 = pneg %p162
    // Predicated region
    $region9: #{up_scale_forward.1} parent=5 // pred_check
      _
    $region10: #{up_scale_forward.1} parent=5 // pred_check_branch
      %165 = sbr.rel (%p162) target = $region12
    $region11: #{up_scale_forward.1} parent=5 // pred_region
      %s166 = ssub.s32 %s10, 1
      // Predicated region
      $region13: #{up_scale_forward.1} parent=11 // pred_check
        %p167 = pneg %p103
      $region14: #{up_scale_forward.1} parent=11 // pred_check_branch
        %169 = sbr.rel (%p167) target = $region16
      $region15: #{up_scale_forward.1} parent=11 // pred_region
        _
      $region16: #{up_scale_forward.1} parent=11 // pred_fallthru
        _
      // Predicated region
      $region17: #{up_scale_forward.1} parent=11 // pred_check
        %p170 = pneg %p124
      $region18: #{up_scale_forward.1} parent=11 // pred_check_branch
        %172 = sbr.rel (%p170) target = $region20
      $region19: #{up_scale_forward.1} parent=11 // pred_region
        _
      $region20: #{up_scale_forward.1} parent=11 // pred_fallthru
        _
    $region12: #{up_scale_forward.1} parent=5 // pred_fallthru
      _
    %p173 = scmp.lt.s32.totalorder %s10, 4
    // Predicated region
    $region21: #{up_scale_forward.1} parent=5 // pred_check
      %p174 = pneg %p173
    $region22: #{up_scale_forward.1} parent=5 // pred_check_branch
      %176 = sbr.rel (%p174) target = $region24
    $region23: #{up_scale_forward.1} parent=5 // pred_region
      // Predicated region
      $region25: #{up_scale_forward.1} parent=23 // pred_check
        %p177 = pneg %p44
      $region26: #{up_scale_forward.1} parent=23 // pred_check_branch
        %179 = sbr.rel (%p177) target = $region28
      $region27: #{up_scale_forward.1} parent=23 // pred_region
        %s180 = smul.u32 20, %s18
        %s181 = ssub.s32 45, %s180
        %p182 = scmp.lt.s32.totalorder %s181, 20
        %s183 = scalar_select %p182, %s181, 20
        %s184 = smul.u32 128, %s183
        %p185 = scmp.lt.s32.totalorder %s17, 1
        %s186 = scalar_select %p185, %s17, 1
        %p187 = scmp.lt.s32.totalorder %s180, 44
        %s188 = scalar_select %p187, %s180, 44
        %s189 = smul.addr %s186, 45
        %s190 = sadd.s32 %s188, %s189
        %s191 = smul.addr %s190, 8
        %s192 = scalar_lea.vmem %s0, %s191
        %s193 = smul.u32 20, %s18
        %s194 = ssub.s32 45, %s193
        %p195 = scmp.lt.s32.totalorder %s194, 20
        %s196 = scalar_select %p195, %s194, 20
        %s197 = smul.u32 128, %s196
      $region28: #{up_scale_forward.1} parent=23 // pred_fallthru
        _
      // Predicated region
      $region29: #{up_scale_forward.1} parent=23 // pred_check
        %p198 = pneg %p76
      $region30: #{up_scale_forward.1} parent=23 // pred_check_branch
        %200 = sbr.rel (%p198) target = $region32
      $region31: #{up_scale_forward.1} parent=23 // pred_region
        %s201 = sadd.s32 %s18, 1
        %s202 = smul.u32 %s201, 4
        %s203 = smul.u32 5, %s202
        %p204 = scmp.lt.s32.totalorder %s17, 1
        %s205 = scalar_select %p204, %s17, 1
        %p206 = scmp.lt.s32.totalorder %s203, 44
        %s207 = scalar_select %p206, %s203, 44
        %s208 = smul.addr %s205, 45
        %s209 = sadd.s32 %s207, %s208
        %s210 = smul.addr %s209, 8
        %s211 = scalar_lea.vmem %s1, %s210
        %s212 = sadd.s32 %s18, 1
        %s213 = smul.u32 %s212, 4
        %s214 = smul.u32 5, %s213
      $region32: #{up_scale_forward.1} parent=23 // pred_fallthru
        _
    $region24: #{up_scale_forward.1} parent=5 // pred_fallthru
      _
    %p215 = scmp.le.s32.totalorder 1, %s10
    %p216 = scmp.lt.s32.totalorder %s10, 5
    %p217 = pnand %p215, %p216
    %p218 = pneg %p217
    // Predicated region
    $region33: #{up_scale_forward.1} parent=5 // pred_check
      _
    $region34: #{up_scale_forward.1} parent=5 // pred_check_branch
      %220 = sbr.rel (%p217) target = $region36
    $region35: #{up_scale_forward.1} parent=5 // pred_region
      %s221 = ssub.s32 %s10, 1
      %s222 = smul.u32 20, %s20
      %s223 = ssub.s32 45, %s222
      %p224 = scmp.lt.s32.totalorder %s223, 20
      %s225 = scalar_select %p224, %s223, 20
      %s226 = smul.u32 128, %s225
      %p227 = scmp.lt.s32.totalorder %s19, 1
      %s228 = scalar_select %p227, %s19, 1
      %p229 = scmp.lt.s32.totalorder %s222, 44
      %s230 = scalar_select %p229, %s222, 44
      %s231 = smul.addr %s228, 45
      %s232 = sadd.s32 %s230, %s231
      %s233 = smul.addr %s232, 8
      %s234 = scalar_lea.vmem %s0, %s233
      %p235 = pneg %p50
      %p236 = pneg %p47
      %s237 = sadd.s32 %s20, 1
      %s238 = smul.u32 %s237, 4
      %s239 = smul.u32 5, %s238
      %p240 = scmp.lt.s32.totalorder %s19, 1
      %s241 = scalar_select %p240, %s19, 1
      %p242 = scmp.lt.s32.totalorder %s239, 44
      %s243 = scalar_select %p242, %s239, 44
      %s244 = smul.addr %s241, 45
      %s245 = sadd.s32 %s243, %s244
      %s246 = smul.addr %s245, 8
      %s247 = scalar_lea.vmem %s1, %s246
      %p248 = pneg %p82
      %p249 = pneg %p79
      %p250 = pneg %p103
      %p251 = pneg %p100
      %p252 = pneg %p124
      %p253 = pneg %p121
      %p254 = pneg %p152
      %p255 = pneg %p149
      %p256 = scmp.lt.s32.totalorder %s19, 1
      %s257 = scalar_select %p256, %s19, 1
      %p258 = scmp.lt.s32.totalorder %s20, 1
      %s259 = scalar_select %p258, %s20, 1
      %s260 = smul.addr %s259, 20
      %s261 = smul.addr %s257, 40
      %s262 = sadd.s32 %s260, %s261
      %s263 = smul.addr %s262, 8
      %s264 = scalar_lea.vmem %s4, %s263
      %s265 = smul.u32 20, %s20
      %s266 = ssub.s32 45, %s265
      %p267 = scmp.lt.s32.totalorder %s266, 20
      %s268 = scalar_select %p267, %s266, 20
      %s269 = smul.u32 128, %s268
      %p270 = scmp.lt.s32.totalorder %s19, 1
      %s271 = scalar_select %p270, %s19, 1
      %p272 = scmp.lt.s32.totalorder %s265, 44
      %s273 = scalar_select %p272, %s265, 44
      %s274 = smul.addr %s271, 45
      %s275 = sadd.s32 %s273, %s274
      %s276 = smul.addr %s275, 8
      %s277 = scalar_lea.vmem %s0, %s276
      %s278 = smul.u32 20, %s20
      %s279 = ssub.s32 45, %s278
      %p280 = scmp.lt.s32.totalorder %s279, 20
      %s281 = scalar_select %p280, %s279, 20
      %s282 = smul.u32 128, %s281
      %s283 = sadd.s32 %s20, 1
      %s284 = smul.u32 %s283, 4
      %s285 = smul.u32 5, %s284
      %p286 = scmp.lt.s32.totalorder %s19, 1
      %s287 = scalar_select %p286, %s19, 1
      %p288 = scmp.lt.s32.totalorder %s285, 44
      %s289 = scalar_select %p288, %s285, 44
      %s290 = smul.addr %s287, 45
      %s291 = sadd.s32 %s289, %s290
      %s292 = smul.addr %s291, 8
      %s293 = scalar_lea.vmem %s1, %s292
      %s294 = sadd.s32 %s20, 1
      %s295 = smul.u32 %s294, 4
      %s296 = smul.u32 5, %s295
      %p297 = scmp.lt.s32.totalorder %s19, 1
      %s298 = scalar_select %p297, %s19, 1
      %p299 = scmp.lt.s32.totalorder %s20, 1
      %s300 = scalar_select %p299, %s20, 1
      %s301 = smul.addr %s300, 20
      %s302 = smul.addr %s298, 40
      %s303 = sadd.s32 %s301, %s302
      %s304 = smul.addr %s303, 8
      %s305 = scalar_lea.vmem %s4, %s304
      %v306 = vld [vmem:[%s277] sm:$0xff]
      %v307 = vld [vmem:[%s277 + $0x8] sm:$0xff]
      %v308 = vld [vmem:[%s277 + $0x10] sm:$0xff]
      %v309 = vld [vmem:[%s277 + $0x18] sm:$0xff]
      %v310 = vld [vmem:[%s277 + $0x20] sm:$0xff]
      %v311 = vld [vmem:[%s277 + $0x28] sm:$0xff]
      %v312 = vld [vmem:[%s277 + $0x30] sm:$0xff]
      %v313 = vld [vmem:[%s277 + $0x38] sm:$0xff]
      %v314 = vld [vmem:[%s277 + $0x40] sm:$0xff]
      %v315 = vld [vmem:[%s277 + $0x48] sm:$0xff]
      %v316 = vld [vmem:[%s277 + $0x50] sm:$0xff]
      %v317 = vld [vmem:[%s277 + $0x58] sm:$0xff]
      %v318 = vld [vmem:[%s277 + $0x60] sm:$0xff]
      %v319 = vld [vmem:[%s277 + $0x68] sm:$0xff]
      %v320 = vld [vmem:[%s277 + $0x70] sm:$0xff]
      %v321 = vld [vmem:[%s277 + $0x78] sm:$0xff]
      %v322 = vld [vmem:[%s277 + $0x80] sm:$0xff]
      %v323 = vld [vmem:[%s277 + $0x88] sm:$0xff]
      %v324 = vld [vmem:[%s277 + $0x90] sm:$0xff]
      %v325 = vld [vmem:[%s277 + $0x98] sm:$0xff]
      %vm326 = vcmask 64512
      %327 = vst.msk [vmem:[#allocation2] sm:$0xff] %vm326, %v306
      %328 = vst.msk [vmem:[#allocation2 + $0x8] sm:$0xff] %vm326, %v307
      %329 = vst.msk [vmem:[#allocation2 + $0x10] sm:$0xff] %vm326, %v308
      %330 = vst.msk [vmem:[#allocation2 + $0x18] sm:$0xff] %vm326, %v309
      %331 = vst.msk [vmem:[#allocation2 + $0x20] sm:$0xff] %vm326, %v310
      %332 = vst.msk [vmem:[#allocation2 + $0x28] sm:$0xff] %vm326, %v311
      %333 = vst.msk [vmem:[#allocation2 + $0x30] sm:$0xff] %vm326, %v312
      %334 = vst.msk [vmem:[#allocation2 + $0x38] sm:$0xff] %vm326, %v313
      %335 = vst.msk [vmem:[#allocation2 + $0x40] sm:$0xff] %vm326, %v314
      %336 = vst.msk [vmem:[#allocation2 + $0x48] sm:$0xff] %vm326, %v315
      %337 = vst.msk [vmem:[#allocation2 + $0x50] sm:$0xff] %vm326, %v316
      %338 = vst.msk [vmem:[#allocation2 + $0x58] sm:$0xff] %vm326, %v317
      %339 = vst.msk [vmem:[#allocation2 + $0x60] sm:$0xff] %vm326, %v318
      %340 = vst.msk [vmem:[#allocation2 + $0x68] sm:$0xff] %vm326, %v319
      %341 = vst.msk [vmem:[#allocation2 + $0x70] sm:$0xff] %vm326, %v320
      %342 = vst.msk [vmem:[#allocation2 + $0x78] sm:$0xff] %vm326, %v321
      %343 = vst.msk [vmem:[#allocation2 + $0x80] sm:$0xff] %vm326, %v322
      %344 = vst.msk [vmem:[#allocation2 + $0x88] sm:$0xff] %vm326, %v323
      %345 = vst.msk [vmem:[#allocation2 + $0x90] sm:$0xff] %vm326, %v324
      %346 = vst.msk [vmem:[#allocation2 + $0x98] sm:$0xff] %vm326, %v325
      %v347 = vld [vmem:[%s293] sm:$0xff]
      %v348 = vld [vmem:[%s293 + $0x8] sm:$0xff]
      %v349 = vld [vmem:[%s293 + $0x10] sm:$0xff]
      %v350 = vld [vmem:[%s293 + $0x18] sm:$0xff]
      %v351 = vld [vmem:[%s293 + $0x20] sm:$0xff]
      %352 = vst.msk [vmem:[#allocation2 + $0xa0] sm:$0xff] %vm326, %v347
      %353 = vst.msk [vmem:[#allocation2 + $0xa8] sm:$0xff] %vm326, %v348
      %354 = vst.msk [vmem:[#allocation2 + $0xb0] sm:$0xff] %vm326, %v349
      %355 = vst.msk [vmem:[#allocation2 + $0xb8] sm:$0xff] %vm326, %v350
      %356 = vst.msk [vmem:[#allocation2 + $0xc0] sm:$0xff] %vm326, %v351
      %357 = vst.msk [vmem:[#allocation2 + $0xc8] sm:$0xff] %vm326, 0.0
      %v358 = vld [vmem:[%s3] sm:$0x1]
      loop: start=0, step=1, limit=4
      $region37: #{up_scale_forward.1} parent=35 // loop_pre_header
        _
      $region38: #{up_scale_forward.1} parent=35 // loop_header
        %s360 = sphi 0, %s364
        %p361 = scmp.ge.s32.totalorder %s360, 4
      $region39: #{up_scale_forward.1} parent=35 // loop_header_branch
        %363 = sbr.rel (%p361) target = $region43
      $region40: #{up_scale_forward.1} parent=35 // loop_body
        %s365 = smul.u32 %s360, 40
        %s366 = scalar_lea.vmem [#allocation2], %s365
        %v367 = vld [vmem:[%s366] sm:$0xff]
        %v368 = vld [vmem:[%s366 + $0x8] sm:$0xff]
        %v369 = vld [vmem:[%s366 + $0x10] sm:$0xff]
        %v370 = vld [vmem:[%s366 + $0x18] sm:$0xff]
        %v371 = vld [vmem:[%s366 + $0x20] sm:$0xff]
        %v372 = vld [vmem:[%s2] sm:$0xff]
        %s373 = sadd.s32 %s365, 1
        %s374 = scalar_lea.vmem [#allocation2], %s373
        %v375 = vld [vmem:[%s374] sm:$0xff]
        %v376 = vld [vmem:[%s374 + $0x8] sm:$0xff]
        %v377 = vld [vmem:[%s374 + $0x10] sm:$0xff]
        %v378 = vld [vmem:[%s374 + $0x18] sm:$0xff]
        %v379 = vld [vmem:[%s374 + $0x20] sm:$0xff]
        %s380 = scalar_lea.vmem %s2, 8
        %v381 = vld [vmem:[%s380] sm:$0xff]
        %v383 = vsel %vm326, %v375, 0
        %v386 = vsel %vm326, %v376, 0
        %v389 = vsel %vm326, %v377, 0
        %v392 = vsel %vm326, %v378, 0
        %v395 = vsel %vm326, %v379, 0
        %397 = vmatprep.subr.mxu0 0.0
        %398 = vmatpush1.msra.mxu0 %v381
        %399 = vmatprep.subr.mxu0 0.0
        %400 = vmatpush1.msra.mxu0 0.0
        %401 = vmatprep.subr.mxu0 0.0
        %402 = vmatpush1.msra.mxu0 0.0
        %403 = vmatprep.subr.mxu0 0.0
        %404 = vmatpush1.msra.mxu0 0.0
        %405 = vmatprep.subr.mxu0 0.0
        %406 = vmatpush1.msra.mxu0 0.0
        %407 = vmatprep.subr.mxu0 0.0
        %408 = vmatpush1.msra.mxu0 0.0
        %409 = vmatprep.subr.mxu0 0.0
        %410 = vmatpush1.msra.mxu0 0.0
        %411 = vmatprep.subr.mxu0 0.0
        %412 = vmatpush1.msra.mxu0 0.0
        %413 = vmatprep.subr.mxu0 0.0
        %414 = vmatpush1.msra.mxu0 0.0
        %415 = vmatprep.subr.mxu0 0.0
        %416 = vmatpush1.msra.mxu0 0.0
        %417 = vmatprep.subr.mxu0 0.0
        %418 = vmatpush1.msra.mxu0 0.0
        %419 = vmatprep.subr.mxu0 0.0
        %420 = vmatpush1.msra.mxu0 0.0
        %421 = vmatprep.subr.mxu0 0.0
        %422 = vmatpush1.msra.mxu0 0.0
        %423 = vmatprep.subr.mxu0 0.0
        %424 = vmatpush1.msra.mxu0 0.0
        %425 = vmatprep.subr.mxu0 0.0
        %426 = vmatpush1.msra.mxu0 0.0
        %427 = vmatprep.subr.mxu0 0.0
        %428 = vmatpush1.msra.mxu0 0.0
        %429 = vmatprep.subr.mxu0 0.0
        %430 = vmatpush1.msra.mxu0 0.0
        %431 = vmatprep.subr.mxu0 0.0
        %432 = vmatpush1.msra.mxu0 0.0
        %433 = vmatprep.subr.mxu0 0.0
        %434 = vmatpush1.msra.mxu0 0.0
        %435 = vmatprep.subr.mxu0 0.0
        %436 = vmatpush1.msra.mxu0 0.0
        %437 = vmatprep.subr.mxu0 0.0
        %438 = vmatpush1.msra.mxu0 0.0
        %439 = vmatprep.subr.mxu0 0.0
        %440 = vmatpush1.msra.mxu0 0.0
        %441 = vmatprep.subr.mxu0 0.0
        %442 = vmatpush1.msra.mxu0 0.0
        %443 = vmatprep.subr.mxu0 0.0
        %444 = vmatpush1.msra.mxu0 0.0
        %445 = vmatprep.subr.mxu0 0.0
        %446 = vmatpush1.msra.mxu0 0.0
        %447 = vmatprep.subr.mxu0 0.0
        %448 = vmatpush1.msra.mxu0 0.0
        %449 = vmatprep.subr.mxu0 0.0
        %450 = vmatpush1.msra.mxu0 0.0
        %451 = vmatprep.subr.mxu0 0.0
        %452 = vmatpush1.msra.mxu0 0.0
        %453 = vmatprep.subr.mxu0 0.0
        %454 = vmatpush1.msra.mxu0 0.0
        %455 = vmatprep.subr.mxu0 0.0
        %456 = vmatpush1.msra.mxu0 0.0
        %457 = vmatprep.subr.mxu0 0.0
        %458 = vmatpush1.msra.mxu0 0.0
        %459 = vmatprep.subr.mxu0 0.0
        %460 = vmatpush1.msra.mxu0 0.0
        %461 = vmatprep.mubr.f32.mxu0 0.0
        %462 = vmatmul.mubr.f32.gmra.mrb[0].mxu0 %v383
        %v463 = vpop.f32.mrb[0].mxu0
        %v464 = vadd.f32 0.0, %v463
        %v465 = vpop.f32.mrb[0].mxu0
        %466 = vmatprep.mubr.f32.mxu0 0.0
        %467 = vmatmul.mubr.f32.gmra.mrb[0].mxu0 %v386
        %v468 = vpop.f32.mrb[0].mxu0
        %v469 = vadd.f32 0.0, %v468
        %v470 = vpop.f32.mrb[0].mxu0
        %471 = vmatprep.mubr.f32.mxu0 0.0
        %472 = vmatmul.mubr.f32.gmra.mrb[0].mxu0 %v389
        %v473 = vpop.f32.mrb[0].mxu0
        %v474 = vadd.f32 0.0, %v473
        %v475 = vpop.f32.mrb[0].mxu0
        %476 = vmatprep.mubr.f32.mxu0 0.0
        %477 = vmatmul.mubr.f32.gmra.mrb[0].mxu0 %v392
        %v478 = vpop.f32.mrb[0].mxu0
        %v479 = vadd.f32 0.0, %v478
        %v480 = vpop.f32.mrb[0].mxu0
        %481 = vmatprep.mubr.f32.mxu0 0.0
        %482 = vmatmul.mubr.f32.gmra.mrb[0].mxu0 %v395
        %v483 = vpop.f32.mrb[0].mxu0
        %v484 = vadd.f32 0.0, %v483
        %v485 = vpop.f32.mrb[0].mxu0
        %486 = vdwg.mxu0
        %v488 = vsel %vm326, %v367, 0
        %v491 = vsel %vm326, %v368, 0
        %v494 = vsel %vm326, %v369, 0
        %v497 = vsel %vm326, %v370, 0
        %v500 = vsel %vm326, %v371, 0
        %502 = vmatprep.subr.mxu0 0.0
        %503 = vmatpush1.msra.mxu0 %v372
        %504 = vmatprep.subr.mxu0 0.0
        %505 = vmatpush1.msra.mxu0 0.0
        %506 = vmatprep.subr.mxu0 0.0
        %507 = vmatpush1.msra.mxu0 0.0
        %508 = vmatprep.subr.mxu0 0.0
        %509 = vmatpush1.msra.mxu0 0.0
        %510 = vmatprep.subr.mxu0 0.0
        %511 = vmatpush1.msra.mxu0 0.0
        %512 = vmatprep.subr.mxu0 0.0
        %513 = vmatpush1.msra.mxu0 0.0
        %514 = vmatprep.subr.mxu0 0.0
        %515 = vmatpush1.msra.mxu0 0.0
        %516 = vmatprep.subr.mxu0 0.0
        %517 = vmatpush1.msra.mxu0 0.0
        %518 = vmatprep.subr.mxu0 0.0
        %519 = vmatpush1.msra.mxu0 0.0
        %520 = vmatprep.subr.mxu0 0.0
        %521 = vmatpush1.msra.mxu0 0.0
        %522 = vmatprep.subr.mxu0 0.0
        %523 = vmatpush1.msra.mxu0 0.0
        %524 = vmatprep.subr.mxu0 0.0
        %525 = vmatpush1.msra.mxu0 0.0
        %526 = vmatprep.subr.mxu0 0.0
        %527 = vmatpush1.msra.mxu0 0.0
        %528 = vmatprep.subr.mxu0 0.0
        %529 = vmatpush1.msra.mxu0 0.0
        %530 = vmatprep.subr.mxu0 0.0
        %531 = vmatpush1.msra.mxu0 0.0
        %532 = vmatprep.subr.mxu0 0.0
        %533 = vmatpush1.msra.mxu0 0.0
        %534 = vmatprep.subr.mxu0 0.0
        %535 = vmatpush1.msra.mxu0 0.0
        %536 = vmatprep.subr.mxu0 0.0
        %537 = vmatpush1.msra.mxu0 0.0
        %538 = vmatprep.subr.mxu0 0.0
        %539 = vmatpush1.msra.mxu0 0.0
        %540 = vmatprep.subr.mxu0 0.0
        %541 = vmatpush1.msra.mxu0 0.0
        %542 = vmatprep.subr.mxu0 0.0
        %543 = vmatpush1.msra.mxu0 0.0
        %544 = vmatprep.subr.mxu0 0.0
        %545 = vmatpush1.msra.mxu0 0.0
        %546 = vmatprep.subr.mxu0 0.0
        %547 = vmatpush1.msra.mxu0 0.0
        %548 = vmatprep.subr.mxu0 0.0
        %549 = vmatpush1.msra.mxu0 0.0
        %550 = vmatprep.subr.mxu0 0.0
        %551 = vmatpush1.msra.mxu0 0.0
        %552 = vmatprep.subr.mxu0 0.0
        %553 = vmatpush1.msra.mxu0 0.0
        %554 = vmatprep.subr.mxu0 0.0
        %555 = vmatpush1.msra.mxu0 0.0
        %556 = vmatprep.subr.mxu0 0.0
        %557 = vmatpush1.msra.mxu0 0.0
        %558 = vmatprep.subr.mxu0 0.0
        %559 = vmatpush1.msra.mxu0 0.0
        %560 = vmatprep.subr.mxu0 0.0
        %561 = vmatpush1.msra.mxu0 0.0
        %562 = vmatprep.subr.mxu0 0.0
        %563 = vmatpush1.msra.mxu0 0.0
        %564 = vmatprep.subr.mxu0 0.0
        %565 = vmatpush1.msra.mxu0 0.0
        %566 = vmatprep.mubr.f32.mxu0 0.0
        %567 = vmatmul.mubr.f32.gmra.mrb[0].mxu0 %v488
        %v568 = vpop.f32.mrb[0].mxu0
        %v569 = vadd.f32 %v464, %v568
        %v570 = vpop.f32.mrb[0].mxu0
        %571 = vmatprep.mubr.f32.mxu0 0.0
        %572 = vmatmul.mubr.f32.gmra.mrb[0].mxu0 %v491
        %v573 = vpop.f32.mrb[0].mxu0
        %v574 = vadd.f32 %v469, %v573
        %v575 = vpop.f32.mrb[0].mxu0
        %576 = vmatprep.mubr.f32.mxu0 0.0
        %577 = vmatmul.mubr.f32.gmra.mrb[0].mxu0 %v494
        %v578 = vpop.f32.mrb[0].mxu0
        %v579 = vadd.f32 %v474, %v578
        %v580 = vpop.f32.mrb[0].mxu0
        %581 = vmatprep.mubr.f32.mxu0 0.0
        %582 = vmatmul.mubr.f32.gmra.mrb[0].mxu0 %v497
        %v583 = vpop.f32.mrb[0].mxu0
        %v584 = vadd.f32 %v479, %v583
        %v585 = vpop.f32.mrb[0].mxu0
        %586 = vmatprep.mubr.f32.mxu0 0.0
        %587 = vmatmul.mubr.f32.gmra.mrb[0].mxu0 %v500
        %v588 = vpop.f32.mrb[0].mxu0
        %v589 = vadd.f32 %v484, %v588
        %v590 = vpop.f32.mrb[0].mxu0
        %591 = vdwg.mxu0
        %s592 = sadd.s32 %s365, 2
        %s593 = scalar_lea.vmem [#allocation2], %s592
        %v594 = vld [vmem:[%s593] sm:$0xff]
        %v595 = vld [vmem:[%s593 + $0x8] sm:$0xff]
        %v596 = vld [vmem:[%s593 + $0x10] sm:$0xff]
        %v597 = vld [vmem:[%s593 + $0x18] sm:$0xff]
        %v598 = vld [vmem:[%s593 + $0x20] sm:$0xff]
        %s599 = scalar_lea.vmem %s2, 16
        %v600 = vld [vmem:[%s599] sm:$0xff]
        %v602 = vsel %vm326, %v594, 0
        %v605 = vsel %vm326, %v595, 0
        %v608 = vsel %vm326, %v596, 0
        %v611 = vsel %vm326, %v597, 0
        %v614 = vsel %vm326, %v598, 0
        %616 = vmatprep.subr.mxu0 0.0
        %617 = vmatpush1.msra.mxu0 %v600
        %618 = vmatprep.subr.mxu0 0.0
        %619 = vmatpush1.msra.mxu0 0.0
        %620 = vmatprep.subr.mxu0 0.0
        %621 = vmatpush1.msra.mxu0 0.0
        %622 = vmatprep.subr.mxu0 0.0
        %623 = vmatpush1.msra.mxu0 0.0
        %624 = vmatprep.subr.mxu0 0.0
        %625 = vmatpush1.msra.mxu0 0.0
        %626 = vmatprep.subr.mxu0 0.0
        %627 = vmatpush1.msra.mxu0 0.0
        %628 = vmatprep.subr.mxu0 0.0
        %629 = vmatpush1.msra.mxu0 0.0
        %630 = vmatprep.subr.mxu0 0.0
        %631 = vmatpush1.msra.mxu0 0.0
        %632 = vmatprep.subr.mxu0 0.0
        %633 = vmatpush1.msra.mxu0 0.0
        %634 = vmatprep.subr.mxu0 0.0
        %635 = vmatpush1.msra.mxu0 0.0
        %636 = vmatprep.subr.mxu0 0.0
        %637 = vmatpush1.msra.mxu0 0.0
        %638 = vmatprep.subr.mxu0 0.0
        %639 = vmatpush1.msra.mxu0 0.0
        %640 = vmatprep.subr.mxu0 0.0
        %641 = vmatpush1.msra.mxu0 0.0
        %642 = vmatprep.subr.mxu0 0.0
        %643 = vmatpush1.msra.mxu0 0.0
        %644 = vmatprep.subr.mxu0 0.0
        %645 = vmatpush1.msra.mxu0 0.0
        %646 = vmatprep.subr.mxu0 0.0
        %647 = vmatpush1.msra.mxu0 0.0
        %648 = vmatprep.subr.mxu0 0.0
        %649 = vmatpush1.msra.mxu0 0.0
        %650 = vmatprep.subr.mxu0 0.0
        %651 = vmatpush1.msra.mxu0 0.0
        %652 = vmatprep.subr.mxu0 0.0
        %653 = vmatpush1.msra.mxu0 0.0
        %654 = vmatprep.subr.mxu0 0.0
        %655 = vmatpush1.msra.mxu0 0.0
        %656 = vmatprep.subr.mxu0 0.0
        %657 = vmatpush1.msra.mxu0 0.0
        %658 = vmatprep.subr.mxu0 0.0
        %659 = vmatpush1.msra.mxu0 0.0
        %660 = vmatprep.subr.mxu0 0.0
        %661 = vmatpush1.msra.mxu0 0.0
        %662 = vmatprep.subr.mxu0 0.0
        %663 = vmatpush1.msra.mxu0 0.0
        %664 = vmatprep.subr.mxu0 0.0
        %665 = vmatpush1.msra.mxu0 0.0
        %666 = vmatprep.subr.mxu0 0.0
        %667 = vmatpush1.msra.mxu0 0.0
        %668 = vmatprep.subr.mxu0 0.0
        %669 = vmatpush1.msra.mxu0 0.0
        %670 = vmatprep.subr.mxu0 0.0
        %671 = vmatpush1.msra.mxu0 0.0
        %672 = vmatprep.subr.mxu0 0.0
        %673 = vmatpush1.msra.mxu0 0.0
        %674 = vmatprep.subr.mxu0 0.0
        %675 = vmatpush1.msra.mxu0 0.0
        %676 = vmatprep.subr.mxu0 0.0
        %677 = vmatpush1.msra.mxu0 0.0
        %678 = vmatprep.subr.mxu0 0.0
        %679 = vmatpush1.msra.mxu0 0.0
        %680 = vmatprep.mubr.f32.mxu0 0.0
        %681 = vmatmul.mubr.f32.gmra.mrb[0].mxu0 %v602
        %v682 = vpop.f32.mrb[0].mxu0
        %v683 = vadd.f32 0.0, %v682
        %v684 = vpop.f32.mrb[0].mxu0
        %685 = vmatprep.mubr.f32.mxu0 0.0
        %686 = vmatmul.mubr.f32.gmra.mrb[0].mxu0 %v605
        %v687 = vpop.f32.mrb[0].mxu0
        %v688 = vadd.f32 0.0, %v687
        %v689 = vpop.f32.mrb[0].mxu0
        %690 = vmatprep.mubr.f32.mxu0 0.0
        %691 = vmatmul.mubr.f32.gmra.mrb[0].mxu0 %v608
        %v692 = vpop.f32.mrb[0].mxu0
        %v693 = vadd.f32 0.0, %v692
        %v694 = vpop.f32.mrb[0].mxu0
        %695 = vmatprep.mubr.f32.mxu0 0.0
        %696 = vmatmul.mubr.f32.gmra.mrb[0].mxu0 %v611
        %v697 = vpop.f32.mrb[0].mxu0
        %v698 = vadd.f32 0.0, %v697
        %v699 = vpop.f32.mrb[0].mxu0
        %700 = vmatprep.mubr.f32.mxu0 0.0
        %701 = vmatmul.mubr.f32.gmra.mrb[0].mxu0 %v614
        %v702 = vpop.f32.mrb[0].mxu0
        %v703 = vadd.f32 0.0, %v702
        %v704 = vpop.f32.mrb[0].mxu0
        %705 = vdwg.mxu0
        %v706 = vadd.f32 %v569, %v683
        %v707 = vadd.f32 %v574, %v688
        %v708 = vadd.f32 %v579, %v693
        %v709 = vadd.f32 %v584, %v698
        %v710 = vadd.f32 %v589, %v703
        %s711 = sadd.s32 %s365, 20
        %s712 = scalar_lea.vmem [#allocation2], %s711
        %v713 = vld [vmem:[%s712] sm:$0xff]
        %v714 = vld [vmem:[%s712 + $0x8] sm:$0xff]
        %v715 = vld [vmem:[%s712 + $0x10] sm:$0xff]
        %v716 = vld [vmem:[%s712 + $0x18] sm:$0xff]
        %v717 = vld [vmem:[%s712 + $0x20] sm:$0xff]
        %s718 = scalar_lea.vmem %s2, 24
        %v719 = vld [vmem:[%s718] sm:$0xff]
        %v721 = vsel %vm326, %v713, 0
        %v724 = vsel %vm326, %v714, 0
        %v727 = vsel %vm326, %v715, 0
        %v730 = vsel %vm326, %v716, 0
        %v733 = vsel %vm326, %v717, 0
        %735 = vmatprep.subr.mxu0 0.0
        %736 = vmatpush1.msra.mxu0 %v719
        %737 = vmatprep.subr.mxu0 0.0
        %738 = vmatpush1.msra.mxu0 0.0
        %739 = vmatprep.subr.mxu0 0.0
        %740 = vmatpush1.msra.mxu0 0.0
        %741 = vmatprep.subr.mxu0 0.0
        %742 = vmatpush1.msra.mxu0 0.0
        %743 = vmatprep.subr.mxu0 0.0
        %744 = vmatpush1.msra.mxu0 0.0
        %745 = vmatprep.subr.mxu0 0.0
        %746 = vmatpush1.msra.mxu0 0.0
        %747 = vmatprep.subr.mxu0 0.0
        %748 = vmatpush1.msra.mxu0 0.0
        %749 = vmatprep.subr.mxu0 0.0
        %750 = vmatpush1.msra.mxu0 0.0
        %751 = vmatprep.subr.mxu0 0.0
        %752 = vmatpush1.msra.mxu0 0.0
        %753 = vmatprep.subr.mxu0 0.0
        %754 = vmatpush1.msra.mxu0 0.0
        %755 = vmatprep.subr.mxu0 0.0
        %756 = vmatpush1.msra.mxu0 0.0
        %757 = vmatprep.subr.mxu0 0.0
        %758 = vmatpush1.msra.mxu0 0.0
        %759 = vmatprep.subr.mxu0 0.0
        %760 = vmatpush1.msra.mxu0 0.0
        %761 = vmatprep.subr.mxu0 0.0
        %762 = vmatpush1.msra.mxu0 0.0
        %763 = vmatprep.subr.mxu0 0.0
        %764 = vmatpush1.msra.mxu0 0.0
        %765 = vmatprep.subr.mxu0 0.0
        %766 = vmatpush1.msra.mxu0 0.0
        %767 = vmatprep.subr.mxu0 0.0
        %768 = vmatpush1.msra.mxu0 0.0
        %769 = vmatprep.subr.mxu0 0.0
        %770 = vmatpush1.msra.mxu0 0.0
        %771 = vmatprep.subr.mxu0 0.0
        %772 = vmatpush1.msra.mxu0 0.0
        %773 = vmatprep.subr.mxu0 0.0
        %774 = vmatpush1.msra.mxu0 0.0
        %775 = vmatprep.subr.mxu0 0.0
        %776 = vmatpush1.msra.mxu0 0.0
        %777 = vmatprep.subr.mxu0 0.0
        %778 = vmatpush1.msra.mxu0 0.0
        %779 = vmatprep.subr.mxu0 0.0
        %780 = vmatpush1.msra.mxu0 0.0
        %781 = vmatprep.subr.mxu0 0.0
        %782 = vmatpush1.msra.mxu0 0.0
        %783 = vmatprep.subr.mxu0 0.0
        %784 = vmatpush1.msra.mxu0 0.0
        %785 = vmatprep.subr.mxu0 0.0
        %786 = vmatpush1.msra.mxu0 0.0
        %787 = vmatprep.subr.mxu0 0.0
        %788 = vmatpush1.msra.mxu0 0.0
        %789 = vmatprep.subr.mxu0 0.0
        %790 = vmatpush1.msra.mxu0 0.0
        %791 = vmatprep.subr.mxu0 0.0
        %792 = vmatpush1.msra.mxu0 0.0
        %793 = vmatprep.subr.mxu0 0.0
        %794 = vmatpush1.msra.mxu0 0.0
        %795 = vmatprep.subr.mxu0 0.0
        %796 = vmatpush1.msra.mxu0 0.0
        %797 = vmatprep.subr.mxu0 0.0
        %798 = vmatpush1.msra.mxu0 0.0
        %799 = vmatprep.mubr.f32.mxu0 0.0
        %800 = vmatmul.mubr.f32.gmra.mrb[0].mxu0 %v721
        %v801 = vpop.f32.mrb[0].mxu0
        %v802 = vadd.f32 0.0, %v801
        %v803 = vpop.f32.mrb[0].mxu0
        %804 = vmatprep.mubr.f32.mxu0 0.0
        %805 = vmatmul.mubr.f32.gmra.mrb[0].mxu0 %v724
        %v806 = vpop.f32.mrb[0].mxu0
        %v807 = vadd.f32 0.0, %v806
        %v808 = vpop.f32.mrb[0].mxu0
        %809 = vmatprep.mubr.f32.mxu0 0.0
        %810 = vmatmul.mubr.f32.gmra.mrb[0].mxu0 %v727
        %v811 = vpop.f32.mrb[0].mxu0
        %v812 = vadd.f32 0.0, %v811
        %v813 = vpop.f32.mrb[0].mxu0
        %814 = vmatprep.mubr.f32.mxu0 0.0
        %815 = vmatmul.mubr.f32.gmra.mrb[0].mxu0 %v730
        %v816 = vpop.f32.mrb[0].mxu0
        %v817 = vadd.f32 0.0, %v816
        %v818 = vpop.f32.mrb[0].mxu0
        %819 = vmatprep.mubr.f32.mxu0 0.0
        %820 = vmatmul.mubr.f32.gmra.mrb[0].mxu0 %v733
        %v821 = vpop.f32.mrb[0].mxu0
        %v822 = vadd.f32 0.0, %v821
        %v823 = vpop.f32.mrb[0].mxu0
        %824 = vdwg.mxu0
        %v825 = vadd.f32 %v706, %v802
        %v826 = vadd.f32 %v707, %v807
        %v827 = vadd.f32 %v708, %v812
        %v828 = vadd.f32 %v709, %v817
        %v829 = vadd.f32 %v710, %v822
        %s830 = sadd.s32 %s365, 21
        %s831 = scalar_lea.vmem [#allocation2], %s830
        %v832 = vld [vmem:[%s831] sm:$0xff]
        %v833 = vld [vmem:[%s831 + $0x8] sm:$0xff]
        %v834 = vld [vmem:[%s831 + $0x10] sm:$0xff]
        %v835 = vld [vmem:[%s831 + $0x18] sm:$0xff]
        %v836 = vld [vmem:[%s831 + $0x20] sm:$0xff]
        %s837 = scalar_lea.vmem %s2, 32
        %v838 = vld [vmem:[%s837] sm:$0xff]
        %v840 = vsel %vm326, %v832, 0
        %v843 = vsel %vm326, %v833, 0
        %v846 = vsel %vm326, %v834, 0
        %v849 = vsel %vm326, %v835, 0
        %v852 = vsel %vm326, %v836, 0
        %854 = vmatprep.subr.mxu0 0.0
        %855 = vmatpush1.msra.mxu0 %v838
        %856 = vmatprep.subr.mxu0 0.0
        %857 = vmatpush1.msra.mxu0 0.0
        %858 = vmatprep.subr.mxu0 0.0
        %859 = vmatpush1.msra.mxu0 0.0
        %860 = vmatprep.subr.mxu0 0.0
        %861 = vmatpush1.msra.mxu0 0.0
        %862 = vmatprep.subr.mxu0 0.0
        %863 = vmatpush1.msra.mxu0 0.0
        %864 = vmatprep.subr.mxu0 0.0
        %865 = vmatpush1.msra.mxu0 0.0
        %866 = vmatprep.subr.mxu0 0.0
        %867 = vmatpush1.msra.mxu0 0.0
        %868 = vmatprep.subr.mxu0 0.0
        %869 = vmatpush1.msra.mxu0 0.0
        %870 = vmatprep.subr.mxu0 0.0
        %871 = vmatpush1.msra.mxu0 0.0
        %872 = vmatprep.subr.mxu0 0.0
        %873 = vmatpush1.msra.mxu0 0.0
        %874 = vmatprep.subr.mxu0 0.0
        %875 = vmatpush1.msra.mxu0 0.0
        %876 = vmatprep.subr.mxu0 0.0
        %877 = vmatpush1.msra.mxu0 0.0
        %878 = vmatprep.subr.mxu0 0.0
        %879 = vmatpush1.msra.mxu0 0.0
        %880 = vmatprep.subr.mxu0 0.0
        %881 = vmatpush1.msra.mxu0 0.0
        %882 = vmatprep.subr.mxu0 0.0
        %883 = vmatpush1.msra.mxu0 0.0
        %884 = vmatprep.subr.mxu0 0.0
        %885 = vmatpush1.msra.mxu0 0.0
        %886 = vmatprep.subr.mxu0 0.0
        %887 = vmatpush1.msra.mxu0 0.0
        %888 = vmatprep.subr.mxu0 0.0
        %889 = vmatpush1.msra.mxu0 0.0
        %890 = vmatprep.subr.mxu0 0.0
        %891 = vmatpush1.msra.mxu0 0.0
        %892 = vmatprep.subr.mxu0 0.0
        %893 = vmatpush1.msra.mxu0 0.0
        %894 = vmatprep.subr.mxu0 0.0
        %895 = vmatpush1.msra.mxu0 0.0
        %896 = vmatprep.subr.mxu0 0.0
        %897 = vmatpush1.msra.mxu0 0.0
        %898 = vmatprep.subr.mxu0 0.0
        %899 = vmatpush1.msra.mxu0 0.0
        %900 = vmatprep.subr.mxu0 0.0
        %901 = vmatpush1.msra.mxu0 0.0
        %902 = vmatprep.subr.mxu0 0.0
        %903 = vmatpush1.msra.mxu0 0.0
        %904 = vmatprep.subr.mxu0 0.0
        %905 = vmatpush1.msra.mxu0 0.0
        %906 = vmatprep.subr.mxu0 0.0
        %907 = vmatpush1.msra.mxu0 0.0
        %908 = vmatprep.subr.mxu0 0.0
        %909 = vmatpush1.msra.mxu0 0.0
        %910 = vmatprep.subr.mxu0 0.0
        %911 = vmatpush1.msra.mxu0 0.0
        %912 = vmatprep.subr.mxu0 0.0
        %913 = vmatpush1.msra.mxu0 0.0
        %914 = vmatprep.subr.mxu0 0.0
        %915 = vmatpush1.msra.mxu0 0.0
        %916 = vmatprep.subr.mxu0 0.0
        %917 = vmatpush1.msra.mxu0 0.0
        %918 = vmatprep.mubr.f32.mxu0 0.0
        %919 = vmatmul.mubr.f32.gmra.mrb[0].mxu0 %v840
        %v920 = vpop.f32.mrb[0].mxu0
        %v921 = vadd.f32 0.0, %v920
        %v922 = vpop.f32.mrb[0].mxu0
        %923 = vmatprep.mubr.f32.mxu0 0.0
        %924 = vmatmul.mubr.f32.gmra.mrb[0].mxu0 %v843
        %v925 = vpop.f32.mrb[0].mxu0
        %v926 = vadd.f32 0.0, %v925
        %v927 = vpop.f32.mrb[0].mxu0
        %928 = vmatprep.mubr.f32.mxu0 0.0
        %929 = vmatmul.mubr.f32.gmra.mrb[0].mxu0 %v846
        %v930 = vpop.f32.mrb[0].mxu0
        %v931 = vadd.f32 0.0, %v930
        %v932 = vpop.f32.mrb[0].mxu0
        %933 = vmatprep.mubr.f32.mxu0 0.0
        %934 = vmatmul.mubr.f32.gmra.mrb[0].mxu0 %v849
        %v935 = vpop.f32.mrb[0].mxu0
        %v936 = vadd.f32 0.0, %v935
        %v937 = vpop.f32.mrb[0].mxu0
        %938 = vmatprep.mubr.f32.mxu0 0.0
        %939 = vmatmul.mubr.f32.gmra.mrb[0].mxu0 %v852
        %v940 = vpop.f32.mrb[0].mxu0
        %v941 = vadd.f32 0.0, %v940
        %v942 = vpop.f32.mrb[0].mxu0
        %943 = vdwg.mxu0
        %v944 = vadd.f32 %v825, %v921
        %v945 = vadd.f32 %v826, %v926
        %v946 = vadd.f32 %v827, %v931
        %v947 = vadd.f32 %v828, %v936
        %v948 = vadd.f32 %v829, %v941
        %s949 = sadd.s32 %s365, 22
        %s950 = scalar_lea.vmem [#allocation2], %s949
        %v951 = vld [vmem:[%s950] sm:$0xff]
        %v952 = vld [vmem:[%s950 + $0x8] sm:$0xff]
        %v953 = vld [vmem:[%s950 + $0x10] sm:$0xff]
        %v954 = vld [vmem:[%s950 + $0x18] sm:$0xff]
        %v955 = vld [vmem:[%s950 + $0x20] sm:$0xff]
        %s956 = scalar_lea.vmem %s2, 40
        %v957 = vld [vmem:[%s956] sm:$0xff]
        %v959 = vsel %vm326, %v951, 0
        %v962 = vsel %vm326, %v952, 0
        %v965 = vsel %vm326, %v953, 0
        %v968 = vsel %vm326, %v954, 0
        %v971 = vsel %vm326, %v955, 0
        %973 = vmatprep.subr.mxu0 0.0
        %974 = vmatpush1.msra.mxu0 %v957
        %975 = vmatprep.subr.mxu0 0.0
        %976 = vmatpush1.msra.mxu0 0.0
        %977 = vmatprep.subr.mxu0 0.0
        %978 = vmatpush1.msra.mxu0 0.0
        %979 = vmatprep.subr.mxu0 0.0
        %980 = vmatpush1.msra.mxu0 0.0
        %981 = vmatprep.subr.mxu0 0.0
        %982 = vmatpush1.msra.mxu0 0.0
        %983 = vmatprep.subr.mxu0 0.0
        %984 = vmatpush1.msra.mxu0 0.0
        %985 = vmatprep.subr.mxu0 0.0
        %986 = vmatpush1.msra.mxu0 0.0
        %987 = vmatprep.subr.mxu0 0.0
        %988 = vmatpush1.msra.mxu0 0.0
        %989 = vmatprep.subr.mxu0 0.0
        %990 = vmatpush1.msra.mxu0 0.0
        %991 = vmatprep.subr.mxu0 0.0
        %992 = vmatpush1.msra.mxu0 0.0
        %993 = vmatprep.subr.mxu0 0.0
        %994 = vmatpush1.msra.mxu0 0.0
        %995 = vmatprep.subr.mxu0 0.0
        %996 = vmatpush1.msra.mxu0 0.0
        %997 = vmatprep.subr.mxu0 0.0
        %998 = vmatpush1.msra.mxu0 0.0
        %999 = vmatprep.subr.mxu0 0.0
        %1000 = vmatpush1.msra.mxu0 0.0
        %1001 = vmatprep.subr.mxu0 0.0
        %1002 = vmatpush1.msra.mxu0 0.0
        %1003 = vmatprep.subr.mxu0 0.0
        %1004 = vmatpush1.msra.mxu0 0.0
        %1005 = vmatprep.subr.mxu0 0.0
        %1006 = vmatpush1.msra.mxu0 0.0
        %1007 = vmatprep.subr.mxu0 0.0
        %1008 = vmatpush1.msra.mxu0 0.0
        %1009 = vmatprep.subr.mxu0 0.0
        %1010 = vmatpush1.msra.mxu0 0.0
        %1011 = vmatprep.subr.mxu0 0.0
        %1012 = vmatpush1.msra.mxu0 0.0
        %1013 = vmatprep.subr.mxu0 0.0
        %1014 = vmatpush1.msra.mxu0 0.0
        %1015 = vmatprep.subr.mxu0 0.0
        %1016 = vmatpush1.msra.mxu0 0.0
        %1017 = vmatprep.subr.mxu0 0.0
        %1018 = vmatpush1.msra.mxu0 0.0
        %1019 = vmatprep.subr.mxu0 0.0
        %1020 = vmatpush1.msra.mxu0 0.0
        %1021 = vmatprep.subr.mxu0 0.0
        %1022 = vmatpush1.msra.mxu0 0.0
        %1023 = vmatprep.subr.mxu0 0.0
        %1024 = vmatpush1.msra.mxu0 0.0
        %1025 = vmatprep.subr.mxu0 0.0
        %1026 = vmatpush1.msra.mxu0 0.0
        %1027 = vmatprep.subr.mxu0 0.0
        %1028 = vmatpush1.msra.mxu0 0.0
        %1029 = vmatprep.subr.mxu0 0.0
        %1030 = vmatpush1.msra.mxu0 0.0
        %1031 = vmatprep.subr.mxu0 0.0
        %1032 = vmatpush1.msra.mxu0 0.0
        %1033 = vmatprep.subr.mxu0 0.0
        %1034 = vmatpush1.msra.mxu0 0.0
        %1035 = vmatprep.subr.mxu0 0.0
        %1036 = vmatpush1.msra.mxu0 0.0
        %1037 = vmatprep.mubr.f32.mxu0 0.0
        %1038 = vmatmul.mubr.f32.gmra.mrb[0].mxu0 %v959
        %v1039 = vpop.f32.mrb[0].mxu0
        %v1040 = vadd.f32 0.0, %v1039
        %v1041 = vpop.f32.mrb[0].mxu0
        %1042 = vmatprep.mubr.f32.mxu0 0.0
        %1043 = vmatmul.mubr.f32.gmra.mrb[0].mxu0 %v962
        %v1044 = vpop.f32.mrb[0].mxu0
        %v1045 = vadd.f32 0.0, %v1044
        %v1046 = vpop.f32.mrb[0].mxu0
        %1047 = vmatprep.mubr.f32.mxu0 0.0
        %1048 = vmatmul.mubr.f32.gmra.mrb[0].mxu0 %v965
        %v1049 = vpop.f32.mrb[0].mxu0
        %v1050 = vadd.f32 0.0, %v1049
        %v1051 = vpop.f32.mrb[0].mxu0
        %1052 = vmatprep.mubr.f32.mxu0 0.0
        %1053 = vmatmul.mubr.f32.gmra.mrb[0].mxu0 %v968
        %v1054 = vpop.f32.mrb[0].mxu0
        %v1055 = vadd.f32 0.0, %v1054
        %v1056 = vpop.f32.mrb[0].mxu0
        %1057 = vmatprep.mubr.f32.mxu0 0.0
        %1058 = vmatmul.mubr.f32.gmra.mrb[0].mxu0 %v971
        %v1059 = vpop.f32.mrb[0].mxu0
        %v1060 = vadd.f32 0.0, %v1059
        %v1061 = vpop.f32.mrb[0].mxu0
        %1062 = vdwg.mxu0
        %v1063 = vadd.f32 %v944, %v1040
        %v1064 = vadd.f32 %v945, %v1045
        %v1065 = vadd.f32 %v946, %v1050
        %v1066 = vadd.f32 %v947, %v1055
        %v1067 = vadd.f32 %v948, %v1060
        %s1068 = sadd.s32 %s365, 40
        %s1069 = scalar_lea.vmem [#allocation2], %s1068
        %v1070 = vld [vmem:[%s1069] sm:$0xff]
        %v1071 = vld [vmem:[%s1069 + $0x8] sm:$0xff]
        %v1072 = vld [vmem:[%s1069 + $0x10] sm:$0xff]
        %v1073 = vld [vmem:[%s1069 + $0x18] sm:$0xff]
        %v1074 = vld [vmem:[%s1069 + $0x20] sm:$0xff]
        %s1075 = scalar_lea.vmem %s2, 48
        %v1076 = vld [vmem:[%s1075] sm:$0xff]
        %v1078 = vsel %vm326, %v1070, 0
        %v1081 = vsel %vm326, %v1071, 0
        %v1084 = vsel %vm326, %v1072, 0
        %v1087 = vsel %vm326, %v1073, 0
        %v1090 = vsel %vm326, %v1074, 0
        %1092 = vmatprep.subr.mxu0 0.0
        %1093 = vmatpush1.msra.mxu0 %v1076
        %1094 = vmatprep.subr.mxu0 0.0
        %1095 = vmatpush1.msra.mxu0 0.0
        %1096 = vmatprep.subr.mxu0 0.0
        %1097 = vmatpush1.msra.mxu0 0.0
        %1098 = vmatprep.subr.mxu0 0.0
        %1099 = vmatpush1.msra.mxu0 0.0
        %1100 = vmatprep.subr.mxu0 0.0
        %1101 = vmatpush1.msra.mxu0 0.0
        %1102 = vmatprep.subr.mxu0 0.0
        %1103 = vmatpush1.msra.mxu0 0.0
        %1104 = vmatprep.subr.mxu0 0.0
        %1105 = vmatpush1.msra.mxu0 0.0
        %1106 = vmatprep.subr.mxu0 0.0
        %1107 = vmatpush1.msra.mxu0 0.0
        %1108 = vmatprep.subr.mxu0 0.0
        %1109 = vmatpush1.msra.mxu0 0.0
        %1110 = vmatprep.subr.mxu0 0.0
        %1111 = vmatpush1.msra.mxu0 0.0
        %1112 = vmatprep.subr.mxu0 0.0
        %1113 = vmatpush1.msra.mxu0 0.0
        %1114 = vmatprep.subr.mxu0 0.0
        %1115 = vmatpush1.msra.mxu0 0.0
        %1116 = vmatprep.subr.mxu0 0.0
        %1117 = vmatpush1.msra.mxu0 0.0
        %1118 = vmatprep.subr.mxu0 0.0
        %1119 = vmatpush1.msra.mxu0 0.0
        %1120 = vmatprep.subr.mxu0 0.0
        %1121 = vmatpush1.msra.mxu0 0.0
        %1122 = vmatprep.subr.mxu0 0.0
        %1123 = vmatpush1.msra.mxu0 0.0
        %1124 = vmatprep.subr.mxu0 0.0
        %1125 = vmatpush1.msra.mxu0 0.0
        %1126 = vmatprep.subr.mxu0 0.0
        %1127 = vmatpush1.msra.mxu0 0.0
        %1128 = vmatprep.subr.mxu0 0.0
        %1129 = vmatpush1.msra.mxu0 0.0
        %1130 = vmatprep.subr.mxu0 0.0
        %1131 = vmatpush1.msra.mxu0 0.0
        %1132 = vmatprep.subr.mxu0 0.0
        %1133 = vmatpush1.msra.mxu0 0.0
        %1134 = vmatprep.subr.mxu0 0.0
        %1135 = vmatpush1.msra.mxu0 0.0
        %1136 = vmatprep.subr.mxu0 0.0
        %1137 = vmatpush1.msra.mxu0 0.0
        %1138 = vmatprep.subr.mxu0 0.0
        %1139 = vmatpush1.msra.mxu0 0.0
        %1140 = vmatprep.subr.mxu0 0.0
        %1141 = vmatpush1.msra.mxu0 0.0
        %1142 = vmatprep.subr.mxu0 0.0
        %1143 = vmatpush1.msra.mxu0 0.0
        %1144 = vmatprep.subr.mxu0 0.0
        %1145 = vmatpush1.msra.mxu0 0.0
        %1146 = vmatprep.subr.mxu0 0.0
        %1147 = vmatpush1.msra.mxu0 0.0
        %1148 = vmatprep.subr.mxu0 0.0
        %1149 = vmatpush1.msra.mxu0 0.0
        %1150 = vmatprep.subr.mxu0 0.0
        %1151 = vmatpush1.msra.mxu0 0.0
        %1152 = vmatprep.subr.mxu0 0.0
        %1153 = vmatpush1.msra.mxu0 0.0
        %1154 = vmatprep.subr.mxu0 0.0
        %1155 = vmatpush1.msra.mxu0 0.0
        %1156 = vmatprep.mubr.f32.mxu0 0.0
        %1157 = vmatmul.mubr.f32.gmra.mrb[0].mxu0 %v1078
        %v1158 = vpop.f32.mrb[0].mxu0
        %v1159 = vadd.f32 0.0, %v1158
        %v1160 = vpop.f32.mrb[0].mxu0
        %1161 = vmatprep.mubr.f32.mxu0 0.0
        %1162 = vmatmul.mubr.f32.gmra.mrb[0].mxu0 %v1081
        %v1163 = vpop.f32.mrb[0].mxu0
        %v1164 = vadd.f32 0.0, %v1163
        %v1165 = vpop.f32.mrb[0].mxu0
        %1166 = vmatprep.mubr.f32.mxu0 0.0
        %1167 = vmatmul.mubr.f32.gmra.mrb[0].mxu0 %v1084
        %v1168 = vpop.f32.mrb[0].mxu0
        %v1169 = vadd.f32 0.0, %v1168
        %v1170 = vpop.f32.mrb[0].mxu0
        %1171 = vmatprep.mubr.f32.mxu0 0.0
        %1172 = vmatmul.mubr.f32.gmra.mrb[0].mxu0 %v1087
        %v1173 = vpop.f32.mrb[0].mxu0
        %v1174 = vadd.f32 0.0, %v1173
        %v1175 = vpop.f32.mrb[0].mxu0
        %1176 = vmatprep.mubr.f32.mxu0 0.0
        %1177 = vmatmul.mubr.f32.gmra.mrb[0].mxu0 %v1090
        %v1178 = vpop.f32.mrb[0].mxu0
        %v1179 = vadd.f32 0.0, %v1178
        %v1180 = vpop.f32.mrb[0].mxu0
        %1181 = vdwg.mxu0
        %v1182 = vadd.f32 %v1063, %v1159
        %v1183 = vadd.f32 %v1064, %v1164
        %v1184 = vadd.f32 %v1065, %v1169
        %v1185 = vadd.f32 %v1066, %v1174
        %v1186 = vadd.f32 %v1067, %v1179
        %s1187 = sadd.s32 %s365, 41
        %s1188 = scalar_lea.vmem [#allocation2], %s1187
        %v1189 = vld [vmem:[%s1188] sm:$0xff]
        %v1190 = vld [vmem:[%s1188 + $0x8] sm:$0xff]
        %v1191 = vld [vmem:[%s1188 + $0x10] sm:$0xff]
        %v1192 = vld [vmem:[%s1188 + $0x18] sm:$0xff]
        %v1193 = vld [vmem:[%s1188 + $0x20] sm:$0xff]
        %s1194 = scalar_lea.vmem %s2, 56
        %v1195 = vld [vmem:[%s1194] sm:$0xff]
        %v1197 = vsel %vm326, %v1189, 0
        %v1200 = vsel %vm326, %v1190, 0
        %v1203 = vsel %vm326, %v1191, 0
        %v1206 = vsel %vm326, %v1192, 0
        %v1209 = vsel %vm326, %v1193, 0
        %1211 = vmatprep.subr.mxu0 0.0
        %1212 = vmatpush1.msra.mxu0 %v1195
        %1213 = vmatprep.subr.mxu0 0.0
        %1214 = vmatpush1.msra.mxu0 0.0
        %1215 = vmatprep.subr.mxu0 0.0
        %1216 = vmatpush1.msra.mxu0 0.0
        %1217 = vmatprep.subr.mxu0 0.0
        %1218 = vmatpush1.msra.mxu0 0.0
        %1219 = vmatprep.subr.mxu0 0.0
        %1220 = vmatpush1.msra.mxu0 0.0
        %1221 = vmatprep.subr.mxu0 0.0
        %1222 = vmatpush1.msra.mxu0 0.0
        %1223 = vmatprep.subr.mxu0 0.0
        %1224 = vmatpush1.msra.mxu0 0.0
        %1225 = vmatprep.subr.mxu0 0.0
        %1226 = vmatpush1.msra.mxu0 0.0
        %1227 = vmatprep.subr.mxu0 0.0
        %1228 = vmatpush1.msra.mxu0 0.0
        %1229 = vmatprep.subr.mxu0 0.0
        %1230 = vmatpush1.msra.mxu0 0.0
        %1231 = vmatprep.subr.mxu0 0.0
        %1232 = vmatpush1.msra.mxu0 0.0
        %1233 = vmatprep.subr.mxu0 0.0
        %1234 = vmatpush1.msra.mxu0 0.0
        %1235 = vmatprep.subr.mxu0 0.0
        %1236 = vmatpush1.msra.mxu0 0.0
        %1237 = vmatprep.subr.mxu0 0.0
        %1238 = vmatpush1.msra.mxu0 0.0
        %1239 = vmatprep.subr.mxu0 0.0
        %1240 = vmatpush1.msra.mxu0 0.0
        %1241 = vmatprep.subr.mxu0 0.0
        %1242 = vmatpush1.msra.mxu0 0.0
        %1243 = vmatprep.subr.mxu0 0.0
        %1244 = vmatpush1.msra.mxu0 0.0
        %1245 = vmatprep.subr.mxu0 0.0
        %1246 = vmatpush1.msra.mxu0 0.0
        %1247 = vmatprep.subr.mxu0 0.0
        %1248 = vmatpush1.msra.mxu0 0.0
        %1249 = vmatprep.subr.mxu0 0.0
        %1250 = vmatpush1.msra.mxu0 0.0
        %1251 = vmatprep.subr.mxu0 0.0
        %1252 = vmatpush1.msra.mxu0 0.0
        %1253 = vmatprep.subr.mxu0 0.0
        %1254 = vmatpush1.msra.mxu0 0.0
        %1255 = vmatprep.subr.mxu0 0.0
        %1256 = vmatpush1.msra.mxu0 0.0
        %1257 = vmatprep.subr.mxu0 0.0
        %1258 = vmatpush1.msra.mxu0 0.0
        %1259 = vmatprep.subr.mxu0 0.0
        %1260 = vmatpush1.msra.mxu0 0.0
        %1261 = vmatprep.subr.mxu0 0.0
        %1262 = vmatpush1.msra.mxu0 0.0
        %1263 = vmatprep.subr.mxu0 0.0
        %1264 = vmatpush1.msra.mxu0 0.0
        %1265 = vmatprep.subr.mxu0 0.0
        %1266 = vmatpush1.msra.mxu0 0.0
        %1267 = vmatprep.subr.mxu0 0.0
        %1268 = vmatpush1.msra.mxu0 0.0
        %1269 = vmatprep.subr.mxu0 0.0
        %1270 = vmatpush1.msra.mxu0 0.0
        %1271 = vmatprep.subr.mxu0 0.0
        %1272 = vmatpush1.msra.mxu0 0.0
        %1273 = vmatprep.subr.mxu0 0.0
        %1274 = vmatpush1.msra.mxu0 0.0
        %1275 = vmatprep.mubr.f32.mxu0 0.0
        %1276 = vmatmul.mubr.f32.gmra.mrb[0].mxu0 %v1197
        %v1277 = vpop.f32.mrb[0].mxu0
        %v1278 = vadd.f32 0.0, %v1277
        %v1279 = vpop.f32.mrb[0].mxu0
        %1280 = vmatprep.mubr.f32.mxu0 0.0
        %1281 = vmatmul.mubr.f32.gmra.mrb[0].mxu0 %v1200
        %v1282 = vpop.f32.mrb[0].mxu0
        %v1283 = vadd.f32 0.0, %v1282
        %v1284 = vpop.f32.mrb[0].mxu0
        %1285 = vmatprep.mubr.f32.mxu0 0.0
        %1286 = vmatmul.mubr.f32.gmra.mrb[0].mxu0 %v1203
        %v1287 = vpop.f32.mrb[0].mxu0
        %v1288 = vadd.f32 0.0, %v1287
        %v1289 = vpop.f32.mrb[0].mxu0
        %1290 = vmatprep.mubr.f32.mxu0 0.0
        %1291 = vmatmul.mubr.f32.gmra.mrb[0].mxu0 %v1206
        %v1292 = vpop.f32.mrb[0].mxu0
        %v1293 = vadd.f32 0.0, %v1292
        %v1294 = vpop.f32.mrb[0].mxu0
        %1295 = vmatprep.mubr.f32.mxu0 0.0
        %1296 = vmatmul.mubr.f32.gmra.mrb[0].mxu0 %v1209
        %v1297 = vpop.f32.mrb[0].mxu0
        %v1298 = vadd.f32 0.0, %v1297
        %v1299 = vpop.f32.mrb[0].mxu0
        %1300 = vdwg.mxu0
        %v1301 = vadd.f32 %v1182, %v1278
        %v1302 = vadd.f32 %v1183, %v1283
        %v1303 = vadd.f32 %v1184, %v1288
        %v1304 = vadd.f32 %v1185, %v1293
        %v1305 = vadd.f32 %v1186, %v1298
        %s1306 = sadd.s32 %s365, 42
        %s1307 = scalar_lea.vmem [#allocation2], %s1306
        %v1308 = vld [vmem:[%s1307] sm:$0xff]
        %v1309 = vld [vmem:[%s1307 + $0x8] sm:$0xff]
        %v1310 = vld [vmem:[%s1307 + $0x10] sm:$0xff]
        %v1311 = vld [vmem:[%s1307 + $0x18] sm:$0xff]
        %v1312 = vld [vmem:[%s1307 + $0x20] sm:$0xff]
        %s1313 = scalar_lea.vmem %s2, 64
        %v1314 = vld [vmem:[%s1313] sm:$0xff]
        %v1316 = vsel %vm326, %v1308, 0
        %v1319 = vsel %vm326, %v1309, 0
        %v1322 = vsel %vm326, %v1310, 0
        %v1325 = vsel %vm326, %v1311, 0
        %v1328 = vsel %vm326, %v1312, 0
        %1330 = vmatprep.subr.mxu0 0.0
        %1331 = vmatpush1.msra.mxu0 %v1314
        %1332 = vmatprep.subr.mxu0 0.0
        %1333 = vmatpush1.msra.mxu0 0.0
        %1334 = vmatprep.subr.mxu0 0.0
        %1335 = vmatpush1.msra.mxu0 0.0
        %1336 = vmatprep.subr.mxu0 0.0
        %1337 = vmatpush1.msra.mxu0 0.0
        %1338 = vmatprep.subr.mxu0 0.0
        %1339 = vmatpush1.msra.mxu0 0.0
        %1340 = vmatprep.subr.mxu0 0.0
        %1341 = vmatpush1.msra.mxu0 0.0
        %1342 = vmatprep.subr.mxu0 0.0
        %1343 = vmatpush1.msra.mxu0 0.0
        %1344 = vmatprep.subr.mxu0 0.0
        %1345 = vmatpush1.msra.mxu0 0.0
        %1346 = vmatprep.subr.mxu0 0.0
        %1347 = vmatpush1.msra.mxu0 0.0
        %1348 = vmatprep.subr.mxu0 0.0
        %1349 = vmatpush1.msra.mxu0 0.0
        %1350 = vmatprep.subr.mxu0 0.0
        %1351 = vmatpush1.msra.mxu0 0.0
        %1352 = vmatprep.subr.mxu0 0.0
        %1353 = vmatpush1.msra.mxu0 0.0
        %1354 = vmatprep.subr.mxu0 0.0
        %1355 = vmatpush1.msra.mxu0 0.0
        %1356 = vmatprep.subr.mxu0 0.0
        %1357 = vmatpush1.msra.mxu0 0.0
        %1358 = vmatprep.subr.mxu0 0.0
        %1359 = vmatpush1.msra.mxu0 0.0
        %1360 = vmatprep.subr.mxu0 0.0
        %1361 = vmatpush1.msra.mxu0 0.0
        %1362 = vmatprep.subr.mxu0 0.0
        %1363 = vmatpush1.msra.mxu0 0.0
        %1364 = vmatprep.subr.mxu0 0.0
        %1365 = vmatpush1.msra.mxu0 0.0
        %1366 = vmatprep.subr.mxu0 0.0
        %1367 = vmatpush1.msra.mxu0 0.0
        %1368 = vmatprep.subr.mxu0 0.0
        %1369 = vmatpush1.msra.mxu0 0.0
        %1370 = vmatprep.subr.mxu0 0.0
        %1371 = vmatpush1.msra.mxu0 0.0
        %1372 = vmatprep.subr.mxu0 0.0
        %1373 = vmatpush1.msra.mxu0 0.0
        %1374 = vmatprep.subr.mxu0 0.0
        %1375 = vmatpush1.msra.mxu0 0.0
        %1376 = vmatprep.subr.mxu0 0.0
        %1377 = vmatpush1.msra.mxu0 0.0
        %1378 = vmatprep.subr.mxu0 0.0
        %1379 = vmatpush1.msra.mxu0 0.0
        %1380 = vmatprep.subr.mxu0 0.0
        %1381 = vmatpush1.msra.mxu0 0.0
        %1382 = vmatprep.subr.mxu0 0.0
        %1383 = vmatpush1.msra.mxu0 0.0
        %1384 = vmatprep.subr.mxu0 0.0
        %1385 = vmatpush1.msra.mxu0 0.0
        %1386 = vmatprep.subr.mxu0 0.0
        %1387 = vmatpush1.msra.mxu0 0.0
        %1388 = vmatprep.subr.mxu0 0.0
        %1389 = vmatpush1.msra.mxu0 0.0
        %1390 = vmatprep.subr.mxu0 0.0
        %1391 = vmatpush1.msra.mxu0 0.0
        %1392 = vmatprep.subr.mxu0 0.0
        %1393 = vmatpush1.msra.mxu0 0.0
        %1394 = vmatprep.mubr.f32.mxu0 0.0
        %1395 = vmatmul.mubr.f32.gmra.mrb[0].mxu0 %v1316
        %v1396 = vpop.f32.mrb[0].mxu0
        %v1397 = vadd.f32 0.0, %v1396
        %v1398 = vpop.f32.mrb[0].mxu0
        %1399 = vmatprep.mubr.f32.mxu0 0.0
        %1400 = vmatmul.mubr.f32.gmra.mrb[0].mxu0 %v1319
        %v1401 = vpop.f32.mrb[0].mxu0
        %v1402 = vadd.f32 0.0, %v1401
        %v1403 = vpop.f32.mrb[0].mxu0
        %1404 = vmatprep.mubr.f32.mxu0 0.0
        %1405 = vmatmul.mubr.f32.gmra.mrb[0].mxu0 %v1322
        %v1406 = vpop.f32.mrb[0].mxu0
        %v1407 = vadd.f32 0.0, %v1406
        %v1408 = vpop.f32.mrb[0].mxu0
        %1409 = vmatprep.mubr.f32.mxu0 0.0
        %1410 = vmatmul.mubr.f32.gmra.mrb[0].mxu0 %v1325
        %v1411 = vpop.f32.mrb[0].mxu0
        %v1412 = vadd.f32 0.0, %v1411
        %v1413 = vpop.f32.mrb[0].mxu0
        %1414 = vmatprep.mubr.f32.mxu0 0.0
        %1415 = vmatmul.mubr.f32.gmra.mrb[0].mxu0 %v1328
        %v1416 = vpop.f32.mrb[0].mxu0
        %v1417 = vadd.f32 0.0, %v1416
        %v1418 = vpop.f32.mrb[0].mxu0
        %1419 = vdwg.mxu0
        %v1420 = vadd.f32 %v1301, %v1397
        %v1421 = vadd.f32 %v1302, %v1402
        %v1422 = vadd.f32 %v1303, %v1407
        %v1423 = vadd.f32 %v1304, %v1412
        %v1424 = vadd.f32 %v1305, %v1417
        %v1426 = vlaneseq
        %v1427 = vshrl.u32 %v1426, 7
        %v1428 = vsub.s32 0, %v1427
        %v1429 = vrot.slane %v358, %v1428
        %v1431 = vadd.f32 %v1420, %v1429
        %v1432 = vadd.f32 %v1421, %v1429
        %v1433 = vadd.f32 %v1422, %v1429
        %v1434 = vadd.f32 %v1423, %v1429
        %v1435 = vadd.f32 %v1424, %v1429
        %v1436 = vmul.f32 %v1431, 0.5
        %v1437 = vmul.f32 %v1432, 0.5
        %v1438 = vmul.f32 %v1433, 0.5
        %v1439 = vmul.f32 %v1434, 0.5
        %v1440 = vmul.f32 %v1435, 0.5
        %v1441 = vmul.f32 %v1431, 0.70710677
        %v1442 = vmul.f32 %v1432, 0.70710677
        %v1443 = vmul.f32 %v1433, 0.70710677
        %v1444 = vmul.f32 %v1434, 0.70710677
        %v1445 = vmul.f32 %v1435, 0.70710677
        %vm1446 = vcmp.ge.f32.partialorder %v1441, 0.0
        %vm1447 = vcmp.ge.f32.partialorder %v1442, 0.0
        %vm1448 = vcmp.ge.f32.partialorder %v1443, 0.0
        %vm1449 = vcmp.ge.f32.partialorder %v1444, 0.0
        %vm1450 = vcmp.ge.f32.partialorder %v1445, 0.0
        %v1451 = vsel %vm1446, 1.0, -1.0
        %v1452 = vsel %vm1447, 1.0, -1.0
        %v1453 = vsel %vm1448, 1.0, -1.0
        %v1454 = vsel %vm1449, 1.0, -1.0
        %v1455 = vsel %vm1450, 1.0, -1.0
        %v1456 = vand.u32 2147483647, %v1441
        %v1457 = vand.u32 2147483647, %v1442
        %v1458 = vand.u32 2147483647, %v1443
        %v1459 = vand.u32 2147483647, %v1444
        %v1460 = vand.u32 2147483647, %v1445
        %v1461 = vmul.f32 %v1456, 0.3275911
        %v1462 = vmul.f32 %v1457, 0.3275911
        %v1463 = vmul.f32 %v1458, 0.3275911
        %v1464 = vmul.f32 %v1459, 0.3275911
        %v1465 = vmul.f32 %v1460, 0.3275911
        %v1466 = vadd.f32 %v1461, 1.0
        %v1467 = vadd.f32 %v1462, 1.0
        %v1468 = vadd.f32 %v1463, 1.0
        %v1469 = vadd.f32 %v1464, 1.0
        %v1470 = vadd.f32 %v1465, 1.0
        %v1471 = vrcp.pop %v1466
        %v1472 = vrcp.pop %v1467
        %v1473 = vrcp.pop %v1468
        %v1474 = vrcp.pop %v1469
        %v1475 = vrcp.pop %v1470
        %v1476 = vmul.f32 %v1466, %v1471
        %v1477 = vmul.f32 %v1467, %v1472
        %v1478 = vmul.f32 %v1468, %v1473
        %v1479 = vmul.f32 %v1469, %v1474
        %v1480 = vmul.f32 %v1470, %v1475
        %v1481 = vsub.f32 2.0, %v1476
        %v1482 = vsub.f32 2.0, %v1477
        %v1483 = vsub.f32 2.0, %v1478
        %v1484 = vsub.f32 2.0, %v1479
        %v1485 = vsub.f32 2.0, %v1480
        %v1486 = vmul.f32 %v1471, %v1481
        %v1487 = vmul.f32 %v1472, %v1482
        %v1488 = vmul.f32 %v1473, %v1483
        %v1489 = vmul.f32 %v1474, %v1484
        %v1490 = vmul.f32 %v1475, %v1485
        %v1491 = vmul.f32 %v1486, 1.0614054
        %v1492 = vmul.f32 %v1487, 1.0614054
        %v1493 = vmul.f32 %v1488, 1.0614054
        %v1494 = vmul.f32 %v1489, 1.0614054
        %v1495 = vmul.f32 %v1490, 1.0614054
        %v1496 = vadd.f32 %v1491, -1.4531521
        %v1497 = vadd.f32 %v1492, -1.4531521
        %v1498 = vadd.f32 %v1493, -1.4531521
        %v1499 = vadd.f32 %v1494, -1.4531521
        %v1500 = vadd.f32 %v1495, -1.4531521
        %v1501 = vmul.f32 %v1496, %v1486
        %v1502 = vmul.f32 %v1497, %v1487
        %v1503 = vmul.f32 %v1498, %v1488
        %v1504 = vmul.f32 %v1499, %v1489
        %v1505 = vmul.f32 %v1500, %v1490
        %v1506 = vadd.f32 %v1501, 1.4214138
        %v1507 = vadd.f32 %v1502, 1.4214138
        %v1508 = vadd.f32 %v1503, 1.4214138
        %v1509 = vadd.f32 %v1504, 1.4214138
        %v1510 = vadd.f32 %v1505, 1.4214138
        %v1511 = vmul.f32 %v1506, %v1486
        %v1512 = vmul.f32 %v1507, %v1487
        %v1513 = vmul.f32 %v1508, %v1488
        %v1514 = vmul.f32 %v1509, %v1489
        %v1515 = vmul.f32 %v1510, %v1490
        %v1516 = vadd.f32 %v1511, -0.28449672
        %v1517 = vadd.f32 %v1512, -0.28449672
        %v1518 = vadd.f32 %v1513, -0.28449672
        %v1519 = vadd.f32 %v1514, -0.28449672
        %v1520 = vadd.f32 %v1515, -0.28449672
        %v1521 = vmul.f32 %v1516, %v1486
        %v1522 = vmul.f32 %v1517, %v1487
        %v1523 = vmul.f32 %v1518, %v1488
        %v1524 = vmul.f32 %v1519, %v1489
        %v1525 = vmul.f32 %v1520, %v1490
        %v1526 = vadd.f32 %v1521, 0.2548296
        %v1527 = vadd.f32 %v1522, 0.2548296
        %v1528 = vadd.f32 %v1523, 0.2548296
        %v1529 = vadd.f32 %v1524, 0.2548296
        %v1530 = vadd.f32 %v1525, 0.2548296
        %v1531 = vmul.f32 %v1526, %v1486
        %v1532 = vmul.f32 %v1527, %v1487
        %v1533 = vmul.f32 %v1528, %v1488
        %v1534 = vmul.f32 %v1529, %v1489
        %v1535 = vmul.f32 %v1530, %v1490
        %v1536 = vsub.f32 0.0, %v1456
        %v1537 = vsub.f32 0.0, %v1457
        %v1538 = vsub.f32 0.0, %v1458
        %v1539 = vsub.f32 0.0, %v1459
        %v1540 = vsub.f32 0.0, %v1460
        %v1541 = vmul.f32 %v1536, %v1456
        %v1542 = vmul.f32 %v1537, %v1457
        %v1543 = vmul.f32 %v1538, %v1458
        %v1544 = vmul.f32 %v1539, %v1459
        %v1545 = vmul.f32 %v1540, %v1460
        %v1546 = vmul.f32 %v1541, 1.442695
        %v1547 = vpow.pop %v1546
        %v1548 = vmul.f32 %v1542, 1.442695
        %v1549 = vpow.pop %v1548
        %v1550 = vmul.f32 %v1543, 1.442695
        %v1551 = vpow.pop %v1550
        %v1552 = vmul.f32 %v1544, 1.442695
        %v1553 = vpow.pop %v1552
        %v1554 = vmul.f32 %v1545, 1.442695
        %v1555 = vpow.pop %v1554
        %v1556 = vmul.f32 %v1531, %v1547
        %v1557 = vmul.f32 %v1532, %v1549
        %v1558 = vmul.f32 %v1533, %v1551
        %v1559 = vmul.f32 %v1534, %v1553
        %v1560 = vmul.f32 %v1535, %v1555
        %v1561 = vsub.f32 1.0, %v1556
        %v1562 = vsub.f32 1.0, %v1557
        %v1563 = vsub.f32 1.0, %v1558
        %v1564 = vsub.f32 1.0, %v1559
        %v1565 = vsub.f32 1.0, %v1560
        %v1566 = vmul.f32 %v1451, %v1561
        %v1567 = vmul.f32 %v1452, %v1562
        %v1568 = vmul.f32 %v1453, %v1563
        %v1569 = vmul.f32 %v1454, %v1564
        %v1570 = vmul.f32 %v1455, %v1565
        %v1571 = vadd.f32 %v1566, 1.0
        %v1572 = vadd.f32 %v1567, 1.0
        %v1573 = vadd.f32 %v1568, 1.0
        %v1574 = vadd.f32 %v1569, 1.0
        %v1575 = vadd.f32 %v1570, 1.0
        %v1576 = vmul.f32 %v1436, %v1571
        %v1577 = vmul.f32 %v1437, %v1572
        %v1578 = vmul.f32 %v1438, %v1573
        %v1579 = vmul.f32 %v1439, %v1574
        %v1580 = vmul.f32 %v1440, %v1575
        %s1581 = scalar_lea.vmem %s305, %s365
        %1582 = vst [vmem:[%s1581] sm:$0xff] %v1576
        %1583 = vst [vmem:[%s1581 + $0x8] sm:$0xff] %v1577
        %1584 = vst [vmem:[%s1581 + $0x10] sm:$0xff] %v1578
        %1585 = vst [vmem:[%s1581 + $0x18] sm:$0xff] %v1579
        %1586 = vst [vmem:[%s1581 + $0x20] sm:$0xff] %v1580
      $region41: #{up_scale_forward.1} parent=35 // loop_footer
        %s364 = sadd.s32 1, %s360
      $region42: #{up_scale_forward.1} parent=35 // loop_footer_branch
        %359 = sbr.rel target = $region38
      $region43: #{up_scale_forward.1} parent=35 // loop_exit
        _
      %p1587 = scmp.lt.s32.totalorder %s19, 1
      %s1588 = scalar_select %p1587, %s19, 1
      %p1589 = scmp.lt.s32.totalorder %s20, 1
      %s1590 = scalar_select %p1589, %s20, 1
      %s1591 = smul.addr %s1590, 20
      %s1592 = smul.addr %s1588, 40
      %s1593 = sadd.s32 %s1591, %s1592
      %s1594 = smul.addr %s1593, 8
      %s1595 = scalar_lea.vmem %s4, %s1594
      // Predicated region
      $region44: #{up_scale_forward.1} parent=35 // pred_check
        %p1596 = pneg %p149
      $region45: #{up_scale_forward.1} parent=35 // pred_check_branch
        %1598 = sbr.rel (%p1596) target = $region47
      $region46: #{up_scale_forward.1} parent=35 // pred_region
        _
      $region47: #{up_scale_forward.1} parent=35 // pred_fallthru
        _
    $region36: #{up_scale_forward.1} parent=5 // pred_fallthru
      _
    %p1599 = scmp.le.s32.totalorder 2, %s10
    // Predicated region
    $region48: #{up_scale_forward.1} parent=5 // pred_check
      %p1600 = pneg %p1599
    $region49: #{up_scale_forward.1} parent=5 // pred_check_branch
      %1602 = sbr.rel (%p1600) target = $region51
    $region50: #{up_scale_forward.1} parent=5 // pred_region
      %s1603 = ssub.s32 %s10, 2
      // Predicated region
      $region52: #{up_scale_forward.1} parent=50 // pred_check
        %p1604 = pneg %p155
      $region53: #{up_scale_forward.1} parent=50 // pred_check_branch
        %1606 = sbr.rel (%p1604) target = $region55
      $region54: #{up_scale_forward.1} parent=50 // pred_region
        %p1607 = scmp.lt.s32.totalorder %s21, 1
        %s1608 = scalar_select %p1607, %s21, 1
        %p1609 = scmp.lt.s32.totalorder %s22, 1
        %s1610 = scalar_select %p1609, %s22, 1
        %s1611 = smul.addr %s1610, 20
        %s1612 = smul.addr %s1608, 40
        %s1613 = sadd.s32 %s1611, %s1612
        %s1614 = smul.addr %s1613, 8
        %s1615 = scalar_lea.vmem %s4, %s1614
      $region55: #{up_scale_forward.1} parent=50 // pred_fallthru
        _
    $region51: #{up_scale_forward.1} parent=5 // pred_fallthru
      _
  $region6: #{up_scale_forward.1} parent=0 // loop_footer
    %s14 = sadd.s32 1, %s10
  $region7: #{up_scale_forward.1} parent=0 // loop_footer_branch
    %9 = sbr.rel target = $region3
  $region8: #{up_scale_forward.1} parent=0 // loop_exit
    _

</llo_original>
